<compile_context>
chip_gen: v7x
topology: tpu7x:2x2x1
jax: 0.10.0
libtpu: 0.0.40
codegen_flags: <defaults>
</compile_context>

<pallas_src>
import jax
import jax.numpy as jnp
from jax import lax
from jax.experimental import pallas as pl
from jax.experimental.pallas import tpu as pltpu


def _round_up(x, m):
    return ((x + m - 1) // m) * m


def _divisor_chunk(n, desired):
    for t in range(min(desired, n), 0, -1):
        if n % t == 0:
            return t
    return 1


# ----------------------------- Pallas kernel ---------------------------------
def _decoder_chunk_kernel(emb_ref, k_ref, ctx_ref, h0_ref,
                          v_ref, whq_ref, bqh_ref, wih_ref, bih_ref,
                          out_ref, hfin_ref,
                          h_scr):
    # grid = (batch_chunks, seq_chunks); the seq axis is the sequential ("arbitrary") one.
    s_idx = pl.program_id(1)

    TB, L, C = ctx_ref.shape
    H = h0_ref.shape[1]
    T = emb_ref.shape[0]
    PAD = out_ref.shape[2] - (H + C)

    # initialize the carried hidden state at the start of each batch chunk's sequence
    @pl.when(s_idx == 0)
    def _():
        h_scr[...] = h0_ref[...].astype(jnp.float32)

    # ---- time-invariant operands, loaded once per grid step (not per timestep) ----
    k = k_ref[...]                       # (TB, L, H)  precomputed ctx @ W_c^T
    ctx = ctx_ref[...]                   # (TB, L, C)
    v = v_ref[...].reshape(1, 1, H)      # (1, 1, H)
    whq = whq_ref[...]                   # (H, 4H) = [W_q ; W_hh]^T  (fused, pre-transposed)
    bqh = bqh_ref[...]                   # (1, 4H) = [b_q , b_hh]
    wih_t = wih_ref[...]                 # (E+C, 3H)  pre-transposed
    bih = bih_ref[...]                   # (1, 3H)
    pad_zeros = jnp.zeros((TB, PAD), jnp.float32) if PAD > 0 else None

    def step(i, h):
        emb_t = emb_ref[i].astype(jnp.float32)          # (TB, E)

        # ---- fused h-projection: one MXU call gives attention query q and GRU gh ----
        qgh = jnp.dot(h.astype(whq.dtype), whq,
                      preferred_element_type=jnp.float32) + bqh    # (TB, 4H)
        q, gh = qgh[:, :H], qgh[:, H:]

        # ---- MLP (Bahdanau) attention; key projection hoisted out of the time loop ----
        s = jnp.tanh(q[:, None, :] + k)                 # (TB, L, H)  f32 elementwise
        # TODO(synk): ctx_lengths masking not implemented (forward exercised with ctx_lengths=None)
        # TODO(synk): at production B*L*H, move scores/ctx_t onto the MXU (dot vs. v / attn @ ctx)
        scores = jnp.sum(s * v, axis=-1)                # (TB, L)
        scores = scores - jnp.max(scores, axis=-1, keepdims=True)
        e = jnp.exp(scores)
        attn = e * pl.reciprocal(jnp.sum(e, axis=-1, keepdims=True), approx=True)
        ctx_t = jnp.sum(attn.reshape(TB, L, 1) * ctx, axis=1).astype(jnp.float32)   # (TB, C)

        # output uses the hidden state BEFORE the recurrence update: [h | ctx_t | pad]
        parts = [h, ctx_t] if PAD == 0 else [h, ctx_t, pad_zeros]
        out_ref[i] = jnp.concatenate(parts, axis=1).astype(out_ref.dtype)

        # ---- GRU cell (PyTorch GRUCell semantics) ----
        x = jnp.concatenate([emb_t, ctx_t], axis=1)     # (TB, E+C)
        gi = jnp.dot(x.astype(wih_t.dtype), wih_t,
                     preferred_element_type=jnp.float32) + bih
        i_r, i_z, i_n = gi[:, :H], gi[:, H:2 * H], gi[:, 2 * H:]
        h_r, h_z, h_n = gh[:, :H], gh[:, H:2 * H], gh[:, 2 * H:]
        r = jax.nn.sigmoid(i_r + h_r)
        z = jax.nn.sigmoid(i_z + h_z)
        n = jnp.tanh(i_n + r * h_n)
        return (1.0 - z) * n + z * h

    h_last = lax.fori_loop(0, T, step, h_scr[...], unroll=True)

    h_scr[...] = h_last
    # Write the carried hidden unconditionally; its output block index depends only on the
    # batch axis, so it stays resident across the sequential axis and only the final value
    # reaches HBM (robust, no last-step when-guard needed).
    hfin_ref[...] = h_last.astype(hfin_ref.dtype)


# ----------------------------- wrapper ----------------------------------------
def decoder_rnnsearch_forward(tgt, ctx, h0, params, *, time_chunk=4,
                              batch_block=None, compute_dtype=jnp.float32):
    """Pallas implementation of DecoderRNNsearch.forward (GRU, mlp attention, ctx_lengths=None).

    Args:
      tgt: (B, S) int32 token ids
      ctx: (B, L, C) float32 context
      h0:  (B, H) float32 initial decoder hidden state (state.hidden[0].squeeze(0))
      params: dict of weights
      time_chunk: timesteps processed per grid iteration (auto-adjusted to a divisor of S)
      batch_block: batch rows per grid block (must be B or a multiple of 8); default B
      compute_dtype: dtype of the MXU operands (use jnp.bfloat16 on v6e/v7x for 2x MXU);
                     accumulation and elementwise math stay f32.
    Returns:
      outputs: (B*S, H + E + C) float32
      h_final: (1, B, H) float32   (hidden.unsqueeze(0))
    """
    B, S = tgt.shape
    _, L, C = ctx.shape
    H = h0.shape[1]
    E = params["emb_table"].shape[1]
    OUT = H + E + C

    T = _divisor_chunk(S, time_chunk)
    TB = B if batch_block is None else batch_block
    assert B % TB == 0, "batch_block must divide B"
    OUT_K = _round_up(H + C, 128)          # lane-dense kernel output width

    # embedding lookup in the wrapper (gather), then seq-major for per-chunk streaming
    emb = params["emb_table"][tgt]                 # (B, S, E)
    emb_s = jnp.transpose(emb, (1, 0, 2))          # (S, B, E)

    # hoisted, time-invariant key projection:  k = ctx @ W_c^T   (B, L, H)
    k_pre = jnp.einsum("blc,hc->blh", ctx, params["wc"])

    # pre-transpose / fuse weights so the kernel issues contraction-major matmuls, no .T in-kernel
    whq_hh = jnp.concatenate([params["wq"], params["whh"]], axis=0).T   # (H, 4H)
    bqh = jnp.concatenate([params["bq"], params["bhh"]], axis=1)        # (1, 4H)
    wih_t = params["wih"].T                                             # (E+C, 3H)

    cd = compute_dtype
    emb_c = emb_s.astype(cd)
    k_c = k_pre.astype(cd)
    ctx_c = ctx.astype(cd)
    whq_c = whq_hh.astype(cd)
    wih_c = wih_t.astype(cd)
    v_f32 = params["v"].astype(jnp.float32)

    const2 = lambda shape: pl.BlockSpec(shape, lambda b, s: (0, 0))

    out_sbo, h_final = pl.pallas_call(
        _decoder_chunk_kernel,
        out_shape=(jax.ShapeDtypeStruct((S, B, OUT_K), jnp.float32),
                   jax.ShapeDtypeStruct((B, H), jnp.float32)),
        grid_spec=pltpu.PrefetchScalarGridSpec(
            num_scalar_prefetch=0,
            grid=(B // TB, S // T),
            in_specs=[
                pl.BlockSpec((T, TB, E), lambda b, s: (s, b, 0)),     # emb chunk
                pl.BlockSpec((TB, L, H), lambda b, s: (b, 0, 0)),     # precomputed keys
                pl.BlockSpec((TB, L, C), lambda b, s: (b, 0, 0)),     # ctx
                pl.BlockSpec((TB, H), lambda b, s: (b, 0)),           # h0
                const2((1, H)),                                       # v
                const2((H, 4 * H)),                                   # [W_q ; W_hh]^T
                const2((1, 4 * H)),                                   # [b_q , b_hh]
                const2((E + C, 3 * H)),                               # W_ih^T
                const2((1, 3 * H)),                                   # b_ih
            ],
            out_specs=[
                pl.BlockSpec((T, TB, OUT_K), lambda b, s: (s, b, 0)),
                pl.BlockSpec((TB, H), lambda b, s: (b, 0)),
            ],
            scratch_shapes=[pltpu.VMEM((TB, H), jnp.float32)],
        ),
        compiler_params=pltpu.CompilerParams(
            dimension_semantics=("parallel", "arbitrary"),
            vmem_limit_bytes=64 * 1024 * 1024),
    )(emb_c, k_c, ctx_c, h0, v_f32, whq_c, bqh, wih_c, params["bih"])

    # reassemble torch layout: per step [h | emb | ctx], stack(dim=1).view(B*S, -1)
    outputs = jnp.concatenate(
        [out_sbo[:, :, :H], emb_s.astype(jnp.float32), out_sbo[:, :, H:H + C]], axis=-1)
    outputs = jnp.transpose(outputs, (1, 0, 2)).reshape(B * S, OUT)
    return outputs, h_final[None]      # hidden.unsqueeze(0)


# ----------------------------- pure-JAX reference -----------------------------
def decoder_reference(tgt, ctx, h0, params):
    B, S = tgt.shape
    _, L, C = ctx.shape
    H = h0.shape[1]
    emb = params["emb_table"][tgt]
    h = h0
    outs = []
    for t in range(S):
        emb_t = emb[:, t, :]
        q = h @ params["wq"].T + params["bq"]
        k = jnp.einsum("blc,hc->blh", ctx, params["wc"])
        s = jnp.tanh(q[:, None, :] + k)
        scores = jnp.sum(s * params["v"].reshape(1, 1, H), axis=-1)
        attn = jax.nn.softmax(scores, axis=-1)
        ctx_t = jnp.einsum("bl,blc->bc", attn, ctx)
        outs.append(jnp.concatenate([h, emb_t, ctx_t], axis=1))
        x = jnp.concatenate([emb_t, ctx_t], axis=1)
        gi = x @ params["wih"].T + params["bih"]
        gh = h @ params["whh"].T + params["bhh"]
        i_r, i_z, i_n = gi[:, :H], gi[:, H:2 * H], gi[:, 2 * H:]
        h_r, h_z, h_n = gh[:, :H], gh[:, H:2 * H], gh[:, 2 * H:]
        r = jax.nn.sigmoid(i_r + h_r)
        z = jax.nn.sigmoid(i_z + h_z)
        n = jnp.tanh(i_n + r * h_n)
        h = (1.0 - z) * n + z * h
    outputs = jnp.stack(outs, axis=1).reshape(B * S, -1)
    return outputs, h[None]


# ----------------------------- parameter init ---------------------------------
def init_params(key, vocab, E, H, C):
    ks = jax.random.split(key, 10)
    # GRUCell: weight_ih ~ N(0, 0.01), weight_hh orthogonal per H-block, biases 0
    wih = 0.01 * jax.random.normal(ks[0], (3 * H, E + C), jnp.float32)
    whh_blocks = []
    for i in range(3):
        m = jax.random.normal(jax.random.fold_in(ks[1], i), (H, H), jnp.float32)
        qmat, _ = jnp.linalg.qr(m)
        whh_blocks.append(qmat)
    whh = jnp.concatenate(whh_blocks, axis=0)
    params = dict(
        emb_table=0.1 * jax.random.normal(ks[2], (vocab, E), jnp.float32),
        # mlp attention: score = v^T tanh(W_q h + b_q + W_c c)
        wq=0.01 * jax.random.normal(ks[3], (H, H), jnp.float32),
        bq=jnp.zeros((1, H), jnp.float32),
        wc=0.01 * jax.random.normal(ks[4], (H, C), jnp.float32),
        v=0.1 * jax.random.normal(ks[5], (1, H), jnp.float32),
        wih=wih,
        bih=jnp.zeros((1, 3 * H), jnp.float32),
        whh=whh,
        bhh=jnp.zeros((1, 3 * H), jnp.float32),
        # enc2dec (used only by init_states): weight ~ N(0, 0.01), bias 0
        enc2dec_w=0.01 * jax.random.normal(ks[6], (H, H), jnp.float32),
        enc2dec_b=jnp.zeros((H,), jnp.float32),
    )
    return params


if __name__ == "__main__":
    B, S, H, E, L = 2, 8, 32, 16, 10
    C = 2 * H          # ctx_dim == 2 * hidden_dim (bidirectional encoder)
    VOCAB = 20

    key = jax.random.PRNGKey(0)
    kp, kt, kc, ke = jax.random.split(key, 4)
    params = init_params(kp, VOCAB, E, H, C)

    tgt = jax.random.randint(kt, (B, S), 0, VOCAB, dtype=jnp.int32)
    ctx = jax.random.normal(kc, (B, L, C), jnp.float32)

    # init_states (GRU branch): hidden = tanh(enc2dec(backward last enc state))
    enc_back = jax.random.normal(ke, (B, H), jnp.float32)
    h0 = jnp.tanh(enc_back @ params["enc2dec_w"].T + params["enc2dec_b"])

    fwd = jax.jit(decoder_rnnsearch_forward)
    outputs, h_final = fwd(tgt, ctx, h0, params)
    jax.block_until_ready(outputs)
    jax.block_until_ready(h_final)

    ref_out, ref_h = decoder_reference(tgt, ctx, h0, params)
    assert outputs.shape == (B * S, H + E + C)
    assert h_final.shape == (1, B, H)
    assert jnp.allclose(outputs, ref_out, atol=5e-3, rtol=5e-3)
    assert jnp.allclose(h_final, ref_h, atol=5e-3, rtol=5e-3)
    print("KERNEL_OK")
</pallas_src>

<mosaic_0001>
module attributes {stable_mosaic.version = 11 : i64} {
  func.func @_decoder_chunk_kernel(%arg0: i32, %arg1: i32, %arg2: memref<4x2x16xf32, #tpu.memory_space<vmem>>, %arg3: memref<2x10x32xf32, #tpu.memory_space<vmem>>, %arg4: memref<2x10x64xf32, #tpu.memory_space<vmem>>, %arg5: memref<2x32xf32, #tpu.memory_space<vmem>>, %arg6: memref<1x32xf32, #tpu.memory_space<vmem>>, %arg7: memref<32x128xf32, #tpu.memory_space<vmem>>, %arg8: memref<1x128xf32, #tpu.memory_space<vmem>>, %arg9: memref<80x96xf32, #tpu.memory_space<vmem>>, %arg10: memref<1x96xf32, #tpu.memory_space<vmem>>, %arg11: memref<4x2x128xf32, #tpu.memory_space<vmem>>, %arg12: memref<2x32xf32, #tpu.memory_space<vmem>>, %arg13: memref<2x32xf32, #tpu.memory_space<vmem>>) attributes {dimension_semantics = [#tpu.dimension_semantics<parallel>, #tpu.dimension_semantics<arbitrary>], iteration_bounds = array<i64: 1, 2>, scalar_prefetch = 0 : i64, scratch_operands = 1 : i64, tpu.core_type = #tpu.core_type<tc>, window_params = [{transform_indices = @transform_0, window_bounds = array<i64: 4, 2, 16>}, {transform_indices = @transform_1, window_bounds = array<i64: 2, 10, 32>}, {transform_indices = @transform_2, window_bounds = array<i64: 2, 10, 64>}, {transform_indices = @transform_3, window_bounds = array<i64: 2, 32>}, {pipeline_mode = #tpu.pipeline_mode<synchronous>, transform_indices = @transform_4, window_bounds = array<i64: 1, 32>}, {pipeline_mode = #tpu.pipeline_mode<synchronous>, transform_indices = @transform_5, window_bounds = array<i64: 32, 128>}, {pipeline_mode = #tpu.pipeline_mode<synchronous>, transform_indices = @transform_6, window_bounds = array<i64: 1, 128>}, {pipeline_mode = #tpu.pipeline_mode<synchronous>, transform_indices = @transform_7, window_bounds = array<i64: 80, 96>}, {pipeline_mode = #tpu.pipeline_mode<synchronous>, transform_indices = @transform_8, window_bounds = array<i64: 1, 96>}, {transform_indices = @transform_9, window_bounds = array<i64: 4, 2, 128>}, {transform_indices = @transform_10, window_bounds = array<i64: 2, 32>}]} {
    %c0_i32 = arith.constant 0 : i32
    %0 = arith.cmpi eq, %arg1, %c0_i32 : i32
    %1 = arith.extui %0 : i1 to i32
    %c0_i32_0 = arith.constant 0 : i32
    %2 = arith.cmpi ne, %1, %c0_i32_0 : i32
    scf.if %2 {
      %c0_75 = arith.constant 0 : index
      %c0_76 = arith.constant 0 : index
      %271 = vector.load %arg5[%c0_75, %c0_76] : memref<2x32xf32, #tpu.memory_space<vmem>>, vector<2x32xf32>
      %c0_77 = arith.constant 0 : index
      %c0_78 = arith.constant 0 : index
      %272 = vector.load %arg13[%c0_77, %c0_78] : memref<2x32xf32, #tpu.memory_space<vmem>>, vector<2x32xf32>
      tpu.vector_store %arg13[%c0_77, %c0_78], %271 {strides = array<i32>} : memref<2x32xf32, #tpu.memory_space<vmem>>, vector<2x32xf32>,
    } else {
    }
    %c0 = arith.constant 0 : index
    %c0_1 = arith.constant 0 : index
    %c0_2 = arith.constant 0 : index
    %3 = vector.load %arg3[%c0, %c0_1, %c0_2] : memref<2x10x32xf32, #tpu.memory_space<vmem>>, vector<2x10x32xf32>
    %c0_3 = arith.constant 0 : index
    %c0_4 = arith.constant 0 : index
    %c0_5 = arith.constant 0 : index
    %4 = vector.load %arg4[%c0_3, %c0_4, %c0_5] : memref<2x10x64xf32, #tpu.memory_space<vmem>>, vector<2x10x64xf32>
    %c0_6 = arith.constant 0 : index
    %c0_7 = arith.constant 0 : index
    %5 = vector.load %arg6[%c0_6, %c0_7] : memref<1x32xf32, #tpu.memory_space<vmem>>, vector<1x32xf32>
    %6 = vector.shape_cast %5 : vector<1x32xf32> to vector<1x1x32xf32>
    %c0_8 = arith.constant 0 : index
    %c0_9 = arith.constant 0 : index
    %7 = vector.load %arg7[%c0_8, %c0_9] : memref<32x128xf32, #tpu.memory_space<vmem>>, vector<32x128xf32>
    %c0_10 = arith.constant 0 : index
    %c0_11 = arith.constant 0 : index
    %8 = vector.load %arg8[%c0_10, %c0_11] : memref<1x128xf32, #tpu.memory_space<vmem>>, vector<1x128xf32>
    %c0_12 = arith.constant 0 : index
    %c0_13 = arith.constant 0 : index
    %9 = vector.load %arg9[%c0_12, %c0_13] : memref<80x96xf32, #tpu.memory_space<vmem>>, vector<80x96xf32>
    %c0_14 = arith.constant 0 : index
    %c0_15 = arith.constant 0 : index
    %10 = vector.load %arg10[%c0_14, %c0_15] : memref<1x96xf32, #tpu.memory_space<vmem>>, vector<1x96xf32>
    %cst = arith.constant 0.000000e+00 : f32
    %11 = vector.broadcast %cst : f32 to vector<2x32xf32>
    %c0_16 = arith.constant 0 : index
    %c0_17 = arith.constant 0 : index
    %12 = vector.load %arg13[%c0_16, %c0_17] : memref<2x32xf32, #tpu.memory_space<vmem>>, vector<2x32xf32>
    %c0_i32_18 = arith.constant 0 : i32
    %13 = arith.index_cast %c0_i32_18 : i32 to index
    %c0_19 = arith.constant 0 : index
    %c0_20 = arith.constant 0 : index
    %14 = vector.load %arg2[%13, %c0_19, %c0_20] : memref<4x2x16xf32, #tpu.memory_space<vmem>>, vector<1x2x16xf32>
    %15 = vector.shape_cast %14 : vector<1x2x16xf32> to vector<2x16xf32>
    %cst_21 = arith.constant dense<0.000000e+00> : vector<2x128xf32>
    %16 = tpu.matmul %12, %7, %cst_21 {dimension_numbers = #tpu.dot_dimension_numbers<[1], [0], [0], [1], [0, 0, 1, 1], [], []>} : vector<2x32xf32>, vector<32x128xf32>, vector<2x128xf32> -> vector<2x128xf32>
    %17 = vector.broadcast %8 : vector<1x128xf32> to vector<2x128xf32>
    %18 = arith.addf %16, %17 : vector<2x128xf32>
    %19 = vector.extract_strided_slice %18 {offsets = [0, 0], sizes = [2, 32], strides = [1, 1]} : vector<2x128xf32> to vector<2x32xf32>
    %20 = vector.extract_strided_slice %18 {offsets = [0, 32], sizes = [2, 96], strides = [1, 1]} : vector<2x128xf32> to vector<2x96xf32>
    %21 = vector.shape_cast %19 : vector<2x32xf32> to vector<2x1x32xf32>
    %22 = vector.broadcast %21 : vector<2x1x32xf32> to vector<2x10x32xf32>
    %23 = arith.addf %22, %3 : vector<2x10x32xf32>
    %24 = math.tanh %23 : vector<2x10x32xf32>
    %25 = vector.broadcast %6 : vector<1x1x32xf32> to vector<2x10x32xf32>
    %26 = arith.mulf %24, %25 : vector<2x10x32xf32>
    %cst_22 = arith.constant dense<0.000000e+00> : vector<2x10xf32>
    %27 = vector.multi_reduction <add>, %26, %cst_22 [2] : vector<2x10x32xf32> to vector<2x10xf32>
    %cst_23 = arith.constant dense<0xFF800000> : vector<2xf32>
    %28 = vector.multi_reduction <maximumf>, %27, %cst_23 [1] : vector<2x10xf32> to vector<2xf32>
    %29 = vector.shape_cast %28 : vector<2xf32> to vector<2x1xf32>
    %30 = vector.broadcast %29 : vector<2x1xf32> to vector<2x10xf32>
    %31 = arith.subf %27, %30 : vector<2x10xf32>
    %32 = math.exp %31 : vector<2x10xf32>
    %cst_24 = arith.constant dense<0.000000e+00> : vector<2xf32>
    %33 = vector.multi_reduction <add>, %32, %cst_24 [1] : vector<2x10xf32> to vector<2xf32>
    %34 = vector.shape_cast %33 : vector<2xf32> to vector<2x1xf32>
    %35 = tpu.reciprocal %34 {approx = true} : vector<2x1xf32> -> vector<2x1xf32>
    %36 = vector.broadcast %35 : vector<2x1xf32> to vector<2x10xf32>
    %37 = arith.mulf %32, %36 : vector<2x10xf32>
    %38 = vector.shape_cast %37 : vector<2x10xf32> to vector<2x10x1xf32>
    %39 = vector.broadcast %38 : vector<2x10x1xf32> to vector<2x10x64xf32>
    %40 = arith.mulf %39, %4 : vector<2x10x64xf32>
    %cst_25 = arith.constant dense<0.000000e+00> : vector<2x64xf32>
    %41 = vector.multi_reduction <add>, %40, %cst_25 [1] : vector<2x10x64xf32> to vector<2x64xf32>
    %42 = tpu.concatenate %12, %41, %11 in 1 : vector<2x32xf32>, vector<2x64xf32>, vector<2x32xf32> -> vector<2x128xf32>
    %43 = arith.index_cast %c0_i32_18 : i32 to index
    %c0_26 = arith.constant 0 : index
    %c0_27 = arith.constant 0 : index
    %44 = vector.load %arg11[%43, %c0_26, %c0_27] : memref<4x2x128xf32, #tpu.memory_space<vmem>>, vector<1x2x128xf32>
    %45 = vector.shape_cast %44 : vector<1x2x128xf32> to vector<2x128xf32>
    %46 = vector.shape_cast %42 : vector<2x128xf32> to vector<1x2x128xf32>
    tpu.vector_store %arg11[%43, %c0_26, %c0_27], %46 {strides = array<i32>} : memref<4x2x128xf32, #tpu.memory_space<vmem>>, vector<1x2x128xf32>,
    %47 = tpu.concatenate %15, %41 in 1 : vector<2x16xf32>, vector<2x64xf32> -> vector<2x80xf32>
    %cst_28 = arith.constant dense<0.000000e+00> : vector<2x96xf32>
    %48 = tpu.matmul %47, %9, %cst_28 {dimension_numbers = #tpu.dot_dimension_numbers<[1], [0], [0], [1], [0, 0, 1, 1], [], []>} : vector<2x80xf32>, vector<80x96xf32>, vector<2x96xf32> -> vector<2x96xf32>
    %49 = vector.broadcast %10 : vector<1x96xf32> to vector<2x96xf32>
    %50 = arith.addf %48, %49 : vector<2x96xf32>
    %51 = vector.extract_strided_slice %50 {offsets = [0, 0], sizes = [2, 32], strides = [1, 1]} : vector<2x96xf32> to vector<2x32xf32>
    %52 = vector.extract_strided_slice %50 {offsets = [0, 32], sizes = [2, 32], strides = [1, 1]} : vector<2x96xf32> to vector<2x32xf32>
    %53 = vector.extract_strided_slice %50 {offsets = [0, 64], sizes = [2, 32], strides = [1, 1]} : vector<2x96xf32> to vector<2x32xf32>
    %54 = vector.extract_strided_slice %20 {offsets = [0, 0], sizes = [2, 32], strides = [1, 1]} : vector<2x96xf32> to vector<2x32xf32>
    %55 = vector.extract_strided_slice %20 {offsets = [0, 32], sizes = [2, 32], strides = [1, 1]} : vector<2x96xf32> to vector<2x32xf32>
    %56 = vector.extract_strided_slice %20 {offsets = [0, 64], sizes = [2, 32], strides = [1, 1]} : vector<2x96xf32> to vector<2x32xf32>
    %57 = arith.addf %51, %54 : vector<2x32xf32>
    %58 = arith.negf %57 : vector<2x32xf32>
    %59 = math.exp %58 : vector<2x32xf32>
    %cst_29 = arith.constant 1.000000e+00 : f32
    %60 = vector.broadcast %cst_29 : f32 to vector<2x32xf32>
    %61 = arith.addf %60, %59 : vector<2x32xf32>
    %62 = arith.divf %60, %61 : vector<2x32xf32>
    %63 = arith.addf %52, %55 : vector<2x32xf32>
    %64 = arith.negf %63 : vector<2x32xf32>
    %65 = math.exp %64 : vector<2x32xf32>
    %cst_30 = arith.constant 1.000000e+00 : f32
    %66 = vector.broadcast %cst_30 : f32 to vector<2x32xf32>
    %67 = arith.addf %66, %65 : vector<2x32xf32>
    %68 = arith.divf %66, %67 : vector<2x32xf32>
    %69 = arith.mulf %62, %56 : vector<2x32xf32>
    %70 = arith.addf %53, %69 : vector<2x32xf32>
    %71 = math.tanh %70 : vector<2x32xf32>
    %cst_31 = arith.constant 1.000000e+00 : f32
    %72 = vector.broadcast %cst_31 : f32 to vector<2x32xf32>
    %73 = arith.subf %72, %68 : vector<2x32xf32>
    %74 = arith.mulf %73, %71 : vector<2x32xf32>
    %75 = arith.mulf %68, %12 : vector<2x32xf32>
    %76 = arith.addf %74, %75 : vector<2x32xf32>
    %c1_i32 = arith.constant 1 : i32
    %77 = arith.index_cast %c1_i32 : i32 to index
    %c0_32 = arith.constant 0 : index
    %c0_33 = arith.constant 0 : index
    %78 = vector.load %arg2[%77, %c0_32, %c0_33] : memref<4x2x16xf32, #tpu.memory_space<vmem>>, vector<1x2x16xf32>
    %79 = vector.shape_cast %78 : vector<1x2x16xf32> to vector<2x16xf32>
    %cst_34 = arith.constant dense<0.000000e+00> : vector<2x128xf32>
    %80 = tpu.matmul %76, %7, %cst_34 {dimension_numbers = #tpu.dot_dimension_numbers<[1], [0], [0], [1], [0, 0, 1, 1], [], []>} : vector<2x32xf32>, vector<32x128xf32>, vector<2x128xf32> -> vector<2x128xf32>
    %81 = vector.broadcast %8 : vector<1x128xf32> to vector<2x128xf32>
    %82 = arith.addf %80, %81 : vector<2x128xf32>
    %83 = vector.extract_strided_slice %82 {offsets = [0, 0], sizes = [2, 32], strides = [1, 1]} : vector<2x128xf32> to vector<2x32xf32>
    %84 = vector.extract_strided_slice %82 {offsets = [0, 32], sizes = [2, 96], strides = [1, 1]} : vector<2x128xf32> to vector<2x96xf32>
    %85 = vector.shape_cast %83 : vector<2x32xf32> to vector<2x1x32xf32>
    %86 = vector.broadcast %85 : vector<2x1x32xf32> to vector<2x10x32xf32>
    %87 = arith.addf %86, %3 : vector<2x10x32xf32>
    %88 = math.tanh %87 : vector<2x10x32xf32>
    %89 = vector.broadcast %6 : vector<1x1x32xf32> to vector<2x10x32xf32>
    %90 = arith.mulf %88, %89 : vector<2x10x32xf32>
    %cst_35 = arith.constant dense<0.000000e+00> : vector<2x10xf32>
    %91 = vector.multi_reduction <add>, %90, %cst_35 [2] : vector<2x10x32xf32> to vector<2x10xf32>
    %cst_36 = arith.constant dense<0xFF800000> : vector<2xf32>
    %92 = vector.multi_reduction <maximumf>, %91, %cst_36 [1] : vector<2x10xf32> to vector<2xf32>
    %93 = vector.shape_cast %92 : vector<2xf32> to vector<2x1xf32>
    %94 = vector.broadcast %93 : vector<2x1xf32> to vector<2x10xf32>
    %95 = arith.subf %91, %94 : vector<2x10xf32>
    %96 = math.exp %95 : vector<2x10xf32>
    %cst_37 = arith.constant dense<0.000000e+00> : vector<2xf32>
    %97 = vector.multi_reduction <add>, %96, %cst_37 [1] : vector<2x10xf32> to vector<2xf32>
    %98 = vector.shape_cast %97 : vector<2xf32> to vector<2x1xf32>
    %99 = tpu.reciprocal %98 {approx = true} : vector<2x1xf32> -> vector<2x1xf32>
    %100 = vector.broadcast %99 : vector<2x1xf32> to vector<2x10xf32>
    %101 = arith.mulf %96, %100 : vector<2x10xf32>
    %102 = vector.shape_cast %101 : vector<2x10xf32> to vector<2x10x1xf32>
    %103 = vector.broadcast %102 : vector<2x10x1xf32> to vector<2x10x64xf32>
    %104 = arith.mulf %103, %4 : vector<2x10x64xf32>
    %cst_38 = arith.constant dense<0.000000e+00> : vector<2x64xf32>
    %105 = vector.multi_reduction <add>, %104, %cst_38 [1] : vector<2x10x64xf32> to vector<2x64xf32>
    %106 = tpu.concatenate %76, %105, %11 in 1 : vector<2x32xf32>, vector<2x64xf32>, vector<2x32xf32> -> vector<2x128xf32>
    %107 = arith.index_cast %c1_i32 : i32 to index
    %c0_39 = arith.constant 0 : index
    %c0_40 = arith.constant 0 : index
    %108 = vector.load %arg11[%107, %c0_39, %c0_40] : memref<4x2x128xf32, #tpu.memory_space<vmem>>, vector<1x2x128xf32>
    %109 = vector.shape_cast %108 : vector<1x2x128xf32> to vector<2x128xf32>
    %110 = vector.shape_cast %106 : vector<2x128xf32> to vector<1x2x128xf32>
    tpu.vector_store %arg11[%107, %c0_39, %c0_40], %110 {strides = array<i32>} : memref<4x2x128xf32, #tpu.memory_space<vmem>>, vector<1x2x128xf32>,
    %111 = tpu.concatenate %79, %105 in 1 : vector<2x16xf32>, vector<2x64xf32> -> vector<2x80xf32>
    %cst_41 = arith.constant dense<0.000000e+00> : vector<2x96xf32>
    %112 = tpu.matmul %111, %9, %cst_41 {dimension_numbers = #tpu.dot_dimension_numbers<[1], [0], [0], [1], [0, 0, 1, 1], [], []>} : vector<2x80xf32>, vector<80x96xf32>, vector<2x96xf32> -> vector<2x96xf32>
    %113 = vector.broadcast %10 : vector<1x96xf32> to vector<2x96xf32>
    %114 = arith.addf %112, %113 : vector<2x96xf32>
    %115 = vector.extract_strided_slice %114 {offsets = [0, 0], sizes = [2, 32], strides = [1, 1]} : vector<2x96xf32> to vector<2x32xf32>
    %116 = vector.extract_strided_slice %114 {offsets = [0, 32], sizes = [2, 32], strides = [1, 1]} : vector<2x96xf32> to vector<2x32xf32>
    %117 = vector.extract_strided_slice %114 {offsets = [0, 64], sizes = [2, 32], strides = [1, 1]} : vector<2x96xf32> to vector<2x32xf32>
    %118 = vector.extract_strided_slice %84 {offsets = [0, 0], sizes = [2, 32], strides = [1, 1]} : vector<2x96xf32> to vector<2x32xf32>
    %119 = vector.extract_strided_slice %84 {offsets = [0, 32], sizes = [2, 32], strides = [1, 1]} : vector<2x96xf32> to vector<2x32xf32>
    %120 = vector.extract_strided_slice %84 {offsets = [0, 64], sizes = [2, 32], strides = [1, 1]} : vector<2x96xf32> to vector<2x32xf32>
    %121 = arith.addf %115, %118 : vector<2x32xf32>
    %122 = arith.negf %121 : vector<2x32xf32>
    %123 = math.exp %122 : vector<2x32xf32>
    %cst_42 = arith.constant 1.000000e+00 : f32
    %124 = vector.broadcast %cst_42 : f32 to vector<2x32xf32>
    %125 = arith.addf %124, %123 : vector<2x32xf32>
    %126 = arith.divf %124, %125 : vector<2x32xf32>
    %127 = arith.addf %116, %119 : vector<2x32xf32>
    %128 = arith.negf %127 : vector<2x32xf32>
    %129 = math.exp %128 : vector<2x32xf32>
    %cst_43 = arith.constant 1.000000e+00 : f32
    %130 = vector.broadcast %cst_43 : f32 to vector<2x32xf32>
    %131 = arith.addf %130, %129 : vector<2x32xf32>
    %132 = arith.divf %130, %131 : vector<2x32xf32>
    %133 = arith.mulf %126, %120 : vector<2x32xf32>
    %134 = arith.addf %117, %133 : vector<2x32xf32>
    %135 = math.tanh %134 : vector<2x32xf32>
    %cst_44 = arith.constant 1.000000e+00 : f32
    %136 = vector.broadcast %cst_44 : f32 to vector<2x32xf32>
    %137 = arith.subf %136, %132 : vector<2x32xf32>
    %138 = arith.mulf %137, %135 : vector<2x32xf32>
    %139 = arith.mulf %132, %76 : vector<2x32xf32>
    %140 = arith.addf %138, %139 : vector<2x32xf32>
    %c2_i32 = arith.constant 2 : i32
    %141 = arith.index_cast %c2_i32 : i32 to index
    %c0_45 = arith.constant 0 : index
    %c0_46 = arith.constant 0 : index
    %142 = vector.load %arg2[%141, %c0_45, %c0_46] : memref<4x2x16xf32, #tpu.memory_space<vmem>>, vector<1x2x16xf32>
    %143 = vector.shape_cast %142 : vector<1x2x16xf32> to vector<2x16xf32>
    %cst_47 = arith.constant dense<0.000000e+00> : vector<2x128xf32>
    %144 = tpu.matmul %140, %7, %cst_47 {dimension_numbers = #tpu.dot_dimension_numbers<[1], [0], [0], [1], [0, 0, 1, 1], [], []>} : vector<2x32xf32>, vector<32x128xf32>, vector<2x128xf32> -> vector<2x128xf32>
    %145 = vector.broadcast %8 : vector<1x128xf32> to vector<2x128xf32>
    %146 = arith.addf %144, %145 : vector<2x128xf32>
    %147 = vector.extract_strided_slice %146 {offsets = [0, 0], sizes = [2, 32], strides = [1, 1]} : vector<2x128xf32> to vector<2x32xf32>
    %148 = vector.extract_strided_slice %146 {offsets = [0, 32], sizes = [2, 96], strides = [1, 1]} : vector<2x128xf32> to vector<2x96xf32>
    %149 = vector.shape_cast %147 : vector<2x32xf32> to vector<2x1x32xf32>
    %150 = vector.broadcast %149 : vector<2x1x32xf32> to vector<2x10x32xf32>
    %151 = arith.addf %150, %3 : vector<2x10x32xf32>
    %152 = math.tanh %151 : vector<2x10x32xf32>
    %153 = vector.broadcast %6 : vector<1x1x32xf32> to vector<2x10x32xf32>
    %154 = arith.mulf %152, %153 : vector<2x10x32xf32>
    %cst_48 = arith.constant dense<0.000000e+00> : vector<2x10xf32>
    %155 = vector.multi_reduction <add>, %154, %cst_48 [2] : vector<2x10x32xf32> to vector<2x10xf32>
    %cst_49 = arith.constant dense<0xFF800000> : vector<2xf32>
    %156 = vector.multi_reduction <maximumf>, %155, %cst_49 [1] : vector<2x10xf32> to vector<2xf32>
    %157 = vector.shape_cast %156 : vector<2xf32> to vector<2x1xf32>
    %158 = vector.broadcast %157 : vector<2x1xf32> to vector<2x10xf32>
    %159 = arith.subf %155, %158 : vector<2x10xf32>
    %160 = math.exp %159 : vector<2x10xf32>
    %cst_50 = arith.constant dense<0.000000e+00> : vector<2xf32>
    %161 = vector.multi_reduction <add>, %160, %cst_50 [1] : vector<2x10xf32> to vector<2xf32>
    %162 = vector.shape_cast %161 : vector<2xf32> to vector<2x1xf32>
    %163 = tpu.reciprocal %162 {approx = true} : vector<2x1xf32> -> vector<2x1xf32>
    %164 = vector.broadcast %163 : vector<2x1xf32> to vector<2x10xf32>
    %165 = arith.mulf %160, %164 : vector<2x10xf32>
    %166 = vector.shape_cast %165 : vector<2x10xf32> to vector<2x10x1xf32>
    %167 = vector.broadcast %166 : vector<2x10x1xf32> to vector<2x10x64xf32>
    %168 = arith.mulf %167, %4 : vector<2x10x64xf32>
    %cst_51 = arith.constant dense<0.000000e+00> : vector<2x64xf32>
    %169 = vector.multi_reduction <add>, %168, %cst_51 [1] : vector<2x10x64xf32> to vector<2x64xf32>
    %170 = tpu.concatenate %140, %169, %11 in 1 : vector<2x32xf32>, vector<2x64xf32>, vector<2x32xf32> -> vector<2x128xf32>
    %171 = arith.index_cast %c2_i32 : i32 to index
    %c0_52 = arith.constant 0 : index
    %c0_53 = arith.constant 0 : index
    %172 = vector.load %arg11[%171, %c0_52, %c0_53] : memref<4x2x128xf32, #tpu.memory_space<vmem>>, vector<1x2x128xf32>
    %173 = vector.shape_cast %172 : vector<1x2x128xf32> to vector<2x128xf32>
    %174 = vector.shape_cast %170 : vector<2x128xf32> to vector<1x2x128xf32>
    tpu.vector_store %arg11[%171, %c0_52, %c0_53], %174 {strides = array<i32>} : memref<4x2x128xf32, #tpu.memory_space<vmem>>, vector<1x2x128xf32>,
    %175 = tpu.concatenate %143, %169 in 1 : vector<2x16xf32>, vector<2x64xf32> -> vector<2x80xf32>
    %cst_54 = arith.constant dense<0.000000e+00> : vector<2x96xf32>
    %176 = tpu.matmul %175, %9, %cst_54 {dimension_numbers = #tpu.dot_dimension_numbers<[1], [0], [0], [1], [0, 0, 1, 1], [], []>} : vector<2x80xf32>, vector<80x96xf32>, vector<2x96xf32> -> vector<2x96xf32>
    %177 = vector.broadcast %10 : vector<1x96xf32> to vector<2x96xf32>
    %178 = arith.addf %176, %177 : vector<2x96xf32>
    %179 = vector.extract_strided_slice %178 {offsets = [0, 0], sizes = [2, 32], strides = [1, 1]} : vector<2x96xf32> to vector<2x32xf32>
    %180 = vector.extract_strided_slice %178 {offsets = [0, 32], sizes = [2, 32], strides = [1, 1]} : vector<2x96xf32> to vector<2x32xf32>
    %181 = vector.extract_strided_slice %178 {offsets = [0, 64], sizes = [2, 32], strides = [1, 1]} : vector<2x96xf32> to vector<2x32xf32>
    %182 = vector.extract_strided_slice %148 {offsets = [0, 0], sizes = [2, 32], strides = [1, 1]} : vector<2x96xf32> to vector<2x32xf32>
    %183 = vector.extract_strided_slice %148 {offsets = [0, 32], sizes = [2, 32], strides = [1, 1]} : vector<2x96xf32> to vector<2x32xf32>
    %184 = vector.extract_strided_slice %148 {offsets = [0, 64], sizes = [2, 32], strides = [1, 1]} : vector<2x96xf32> to vector<2x32xf32>
    %185 = arith.addf %179, %182 : vector<2x32xf32>
    %186 = arith.negf %185 : vector<2x32xf32>
    %187 = math.exp %186 : vector<2x32xf32>
    %cst_55 = arith.constant 1.000000e+00 : f32
    %188 = vector.broadcast %cst_55 : f32 to vector<2x32xf32>
    %189 = arith.addf %188, %187 : vector<2x32xf32>
    %190 = arith.divf %188, %189 : vector<2x32xf32>
    %191 = arith.addf %180, %183 : vector<2x32xf32>
    %192 = arith.negf %191 : vector<2x32xf32>
    %193 = math.exp %192 : vector<2x32xf32>
    %cst_56 = arith.constant 1.000000e+00 : f32
    %194 = vector.broadcast %cst_56 : f32 to vector<2x32xf32>
    %195 = arith.addf %194, %193 : vector<2x32xf32>
    %196 = arith.divf %194, %195 : vector<2x32xf32>
    %197 = arith.mulf %190, %184 : vector<2x32xf32>
    %198 = arith.addf %181, %197 : vector<2x32xf32>
    %199 = math.tanh %198 : vector<2x32xf32>
    %cst_57 = arith.constant 1.000000e+00 : f32
    %200 = vector.broadcast %cst_57 : f32 to vector<2x32xf32>
    %201 = arith.subf %200, %196 : vector<2x32xf32>
    %202 = arith.mulf %201, %199 : vector<2x32xf32>
    %203 = arith.mulf %196, %140 : vector<2x32xf32>
    %204 = arith.addf %202, %203 : vector<2x32xf32>
    %c3_i32 = arith.constant 3 : i32
    %205 = arith.index_cast %c3_i32 : i32 to index
    %c0_58 = arith.constant 0 : index
    %c0_59 = arith.constant 0 : index
    %206 = vector.load %arg2[%205, %c0_58, %c0_59] : memref<4x2x16xf32, #tpu.memory_space<vmem>>, vector<1x2x16xf32>
    %207 = vector.shape_cast %206 : vector<1x2x16xf32> to vector<2x16xf32>
    %cst_60 = arith.constant dense<0.000000e+00> : vector<2x128xf32>
    %208 = tpu.matmul %204, %7, %cst_60 {dimension_numbers = #tpu.dot_dimension_numbers<[1], [0], [0], [1], [0, 0, 1, 1], [], []>} : vector<2x32xf32>, vector<32x128xf32>, vector<2x128xf32> -> vector<2x128xf32>
    %209 = vector.broadcast %8 : vector<1x128xf32> to vector<2x128xf32>
    %210 = arith.addf %208, %209 : vector<2x128xf32>
    %211 = vector.extract_strided_slice %210 {offsets = [0, 0], sizes = [2, 32], strides = [1, 1]} : vector<2x128xf32> to vector<2x32xf32>
    %212 = vector.extract_strided_slice %210 {offsets = [0, 32], sizes = [2, 96], strides = [1, 1]} : vector<2x128xf32> to vector<2x96xf32>
    %213 = vector.shape_cast %211 : vector<2x32xf32> to vector<2x1x32xf32>
    %214 = vector.broadcast %213 : vector<2x1x32xf32> to vector<2x10x32xf32>
    %215 = arith.addf %214, %3 : vector<2x10x32xf32>
    %216 = math.tanh %215 : vector<2x10x32xf32>
    %217 = vector.broadcast %6 : vector<1x1x32xf32> to vector<2x10x32xf32>
    %218 = arith.mulf %216, %217 : vector<2x10x32xf32>
    %cst_61 = arith.constant dense<0.000000e+00> : vector<2x10xf32>
    %219 = vector.multi_reduction <add>, %218, %cst_61 [2] : vector<2x10x32xf32> to vector<2x10xf32>
    %cst_62 = arith.constant dense<0xFF800000> : vector<2xf32>
    %220 = vector.multi_reduction <maximumf>, %219, %cst_62 [1] : vector<2x10xf32> to vector<2xf32>
    %221 = vector.shape_cast %220 : vector<2xf32> to vector<2x1xf32>
    %222 = vector.broadcast %221 : vector<2x1xf32> to vector<2x10xf32>
    %223 = arith.subf %219, %222 : vector<2x10xf32>
    %224 = math.exp %223 : vector<2x10xf32>
    %cst_63 = arith.constant dense<0.000000e+00> : vector<2xf32>
    %225 = vector.multi_reduction <add>, %224, %cst_63 [1] : vector<2x10xf32> to vector<2xf32>
    %226 = vector.shape_cast %225 : vector<2xf32> to vector<2x1xf32>
    %227 = tpu.reciprocal %226 {approx = true} : vector<2x1xf32> -> vector<2x1xf32>
    %228 = vector.broadcast %227 : vector<2x1xf32> to vector<2x10xf32>
    %229 = arith.mulf %224, %228 : vector<2x10xf32>
    %230 = vector.shape_cast %229 : vector<2x10xf32> to vector<2x10x1xf32>
    %231 = vector.broadcast %230 : vector<2x10x1xf32> to vector<2x10x64xf32>
    %232 = arith.mulf %231, %4 : vector<2x10x64xf32>
    %cst_64 = arith.constant dense<0.000000e+00> : vector<2x64xf32>
    %233 = vector.multi_reduction <add>, %232, %cst_64 [1] : vector<2x10x64xf32> to vector<2x64xf32>
    %234 = tpu.concatenate %204, %233, %11 in 1 : vector<2x32xf32>, vector<2x64xf32>, vector<2x32xf32> -> vector<2x128xf32>
    %235 = arith.index_cast %c3_i32 : i32 to index
    %c0_65 = arith.constant 0 : index
    %c0_66 = arith.constant 0 : index
    %236 = vector.load %arg11[%235, %c0_65, %c0_66] : memref<4x2x128xf32, #tpu.memory_space<vmem>>, vector<1x2x128xf32>
    %237 = vector.shape_cast %236 : vector<1x2x128xf32> to vector<2x128xf32>
    %238 = vector.shape_cast %234 : vector<2x128xf32> to vector<1x2x128xf32>
    tpu.vector_store %arg11[%235, %c0_65, %c0_66], %238 {strides = array<i32>} : memref<4x2x128xf32, #tpu.memory_space<vmem>>, vector<1x2x128xf32>,
    %239 = tpu.concatenate %207, %233 in 1 : vector<2x16xf32>, vector<2x64xf32> -> vector<2x80xf32>
    %cst_67 = arith.constant dense<0.000000e+00> : vector<2x96xf32>
    %240 = tpu.matmul %239, %9, %cst_67 {dimension_numbers = #tpu.dot_dimension_numbers<[1], [0], [0], [1], [0, 0, 1, 1], [], []>} : vector<2x80xf32>, vector<80x96xf32>, vector<2x96xf32> -> vector<2x96xf32>
    %241 = vector.broadcast %10 : vector<1x96xf32> to vector<2x96xf32>
    %242 = arith.addf %240, %241 : vector<2x96xf32>
    %243 = vector.extract_strided_slice %242 {offsets = [0, 0], sizes = [2, 32], strides = [1, 1]} : vector<2x96xf32> to vector<2x32xf32>
    %244 = vector.extract_strided_slice %242 {offsets = [0, 32], sizes = [2, 32], strides = [1, 1]} : vector<2x96xf32> to vector<2x32xf32>
    %245 = vector.extract_strided_slice %242 {offsets = [0, 64], sizes = [2, 32], strides = [1, 1]} : vector<2x96xf32> to vector<2x32xf32>
    %246 = vector.extract_strided_slice %212 {offsets = [0, 0], sizes = [2, 32], strides = [1, 1]} : vector<2x96xf32> to vector<2x32xf32>
    %247 = vector.extract_strided_slice %212 {offsets = [0, 32], sizes = [2, 32], strides = [1, 1]} : vector<2x96xf32> to vector<2x32xf32>
    %248 = vector.extract_strided_slice %212 {offsets = [0, 64], sizes = [2, 32], strides = [1, 1]} : vector<2x96xf32> to vector<2x32xf32>
    %249 = arith.addf %243, %246 : vector<2x32xf32>
    %250 = arith.negf %249 : vector<2x32xf32>
    %251 = math.exp %250 : vector<2x32xf32>
    %cst_68 = arith.constant 1.000000e+00 : f32
    %252 = vector.broadcast %cst_68 : f32 to vector<2x32xf32>
    %253 = arith.addf %252, %251 : vector<2x32xf32>
    %254 = arith.divf %252, %253 : vector<2x32xf32>
    %255 = arith.addf %244, %247 : vector<2x32xf32>
    %256 = arith.negf %255 : vector<2x32xf32>
    %257 = math.exp %256 : vector<2x32xf32>
    %cst_69 = arith.constant 1.000000e+00 : f32
    %258 = vector.broadcast %cst_69 : f32 to vector<2x32xf32>
    %259 = arith.addf %258, %257 : vector<2x32xf32>
    %260 = arith.divf %258, %259 : vector<2x32xf32>
    %261 = arith.mulf %254, %248 : vector<2x32xf32>
    %262 = arith.addf %245, %261 : vector<2x32xf32>
    %263 = math.tanh %262 : vector<2x32xf32>
    %cst_70 = arith.constant 1.000000e+00 : f32
    %264 = vector.broadcast %cst_70 : f32 to vector<2x32xf32>
    %265 = arith.subf %264, %260 : vector<2x32xf32>
    %266 = arith.mulf %265, %263 : vector<2x32xf32>
    %267 = arith.mulf %260, %204 : vector<2x32xf32>
    %268 = arith.addf %266, %267 : vector<2x32xf32>
    %c4_i32 = arith.constant 4 : i32
    %c0_71 = arith.constant 0 : index
    %c0_72 = arith.constant 0 : index
    %269 = vector.load %arg13[%c0_71, %c0_72] : memref<2x32xf32, #tpu.memory_space<vmem>>, vector<2x32xf32>
    tpu.vector_store %arg13[%c0_71, %c0_72], %268 {strides = array<i32>} : memref<2x32xf32, #tpu.memory_space<vmem>>, vector<2x32xf32>,
    %c0_73 = arith.constant 0 : index
    %c0_74 = arith.constant 0 : index
    %270 = vector.load %arg12[%c0_73, %c0_74] : memref<2x32xf32, #tpu.memory_space<vmem>>, vector<2x32xf32>
    tpu.vector_store %arg12[%c0_73, %c0_74], %268 {strides = array<i32>} : memref<2x32xf32, #tpu.memory_space<vmem>>, vector<2x32xf32>,
    return
  }
  func.func @transform_0(%arg0: i32, %arg1: i32) -> (i32, i32, i32) {
    %c0_i32 = arith.constant 0 : i32
    %c0_i32_0 = arith.constant 0 : i32
    return %arg1, %arg0, %c0_i32 : i32, i32, i32
  }
  func.func @transform_1(%arg0: i32, %arg1: i32) -> (i32, i32, i32) {
    %c0_i32 = arith.constant 0 : i32
    %c0_i32_0 = arith.constant 0 : i32
    %c0_i32_1 = arith.constant 0 : i32
    return %arg0, %c0_i32, %c0_i32_0 : i32, i32, i32
  }
  func.func @transform_2(%arg0: i32, %arg1: i32) -> (i32, i32, i32) {
    %c0_i32 = arith.constant 0 : i32
    %c0_i32_0 = arith.constant 0 : i32
    %c0_i32_1 = arith.constant 0 : i32
    return %arg0, %c0_i32, %c0_i32_0 : i32, i32, i32
  }
  func.func @transform_3(%arg0: i32, %arg1: i32) -> (i32, i32) {
    %c0_i32 = arith.constant 0 : i32
    %c0_i32_0 = arith.constant 0 : i32
    return %arg0, %c0_i32 : i32, i32
  }
  func.func @transform_4(%arg0: i32, %arg1: i32) -> (i32, i32) {
    %c0_i32 = arith.constant 0 : i32
    %c0_i32_0 = arith.constant 0 : i32
    %c0_i32_1 = arith.constant 0 : i32
    return %c0_i32, %c0_i32_0 : i32, i32
  }
  func.func @transform_5(%arg0: i32, %arg1: i32) -> (i32, i32) {
    %c0_i32 = arith.constant 0 : i32
    %c0_i32_0 = arith.constant 0 : i32
    %c0_i32_1 = arith.constant 0 : i32
    return %c0_i32, %c0_i32_0 : i32, i32
  }
  func.func @transform_6(%arg0: i32, %arg1: i32) -> (i32, i32) {
    %c0_i32 = arith.constant 0 : i32
    %c0_i32_0 = arith.constant 0 : i32
    %c0_i32_1 = arith.constant 0 : i32
    return %c0_i32, %c0_i32_0 : i32, i32
  }
  func.func @transform_7(%arg0: i32, %arg1: i32) -> (i32, i32) {
    %c0_i32 = arith.constant 0 : i32
    %c0_i32_0 = arith.constant 0 : i32
    %c0_i32_1 = arith.constant 0 : i32
    return %c0_i32, %c0_i32_0 : i32, i32
  }
  func.func @transform_8(%arg0: i32, %arg1: i32) -> (i32, i32) {
    %c0_i32 = arith.constant 0 : i32
    %c0_i32_0 = arith.constant 0 : i32
    %c0_i32_1 = arith.constant 0 : i32
    return %c0_i32, %c0_i32_0 : i32, i32
  }
  func.func @transform_9(%arg0: i32, %arg1: i32) -> (i32, i32, i32) {
    %c0_i32 = arith.constant 0 : i32
    %c0_i32_0 = arith.constant 0 : i32
    return %arg1, %arg0, %c0_i32 : i32, i32, i32
  }
  func.func @transform_10(%arg0: i32, %arg1: i32) -> (i32, i32) {
    %c0_i32 = arith.constant 0 : i32
    %c0_i32_0 = arith.constant 0 : i32
    return %arg0, %c0_i32 : i32, i32
  }
}

</mosaic_0001>

<llo_original>
// kernel: decoder_rnnsearch_forward.1
$region0: #{decoder_rnnsearch_forward.1}
  #allocation0 [shape = 'u32[]', space=smem, size = 0x4, offset = 0x4, fixed_abs, tag = 'smem constant byte address 0x4 - core index']
  #allocation1 [shape = 'u32[144,128]{1,0:T(1,128)}', space=vmem, size = 0x12000, scoped, tag = 'internal scratch']
  #allocation2 [shape = 'f32[2,32]{1,0:T(2,128)}', space=vmem, size = 0x400, scoped, tag = 'scratch operand']
  %s0 = inlined_call_operand.hbm [shape: f32[8,2,16], index: 0, kind: input, shape index: {}]
  %s1 = inlined_call_operand.hbm [shape: f32[2,10,32], index: 1, kind: input, shape index: {}]
  %s2 = inlined_call_operand.hbm [shape: f32[2,10,64], index: 2, kind: input, shape index: {}]
  %s3 = inlined_call_operand.hbm [shape: f32[2,32], index: 3, kind: input, shape index: {}]
  %s4 = inlined_call_operand.hbm [shape: f32[1,32], index: 4, kind: input, shape index: {}]
  %s5 = inlined_call_operand.hbm [shape: f32[32,128], index: 5, kind: input, shape index: {}]
  %s6 = inlined_call_operand.hbm [shape: f32[1,128], index: 6, kind: input, shape index: {}]
  %s7 = inlined_call_operand.hbm [shape: f32[80,96], index: 7, kind: input, shape index: {}]
  %s8 = inlined_call_operand.hbm [shape: f32[1,96], index: 8, kind: input, shape index: {}]
  %s9 = inlined_call_operand.hbm [shape: f32[8,2,128], index: 9, kind: output, shape index: {0}]
  %s10 = inlined_call_operand.hbm [shape: f32[2,32], index: 10, kind: output, shape index: {1}]
  %11 = xla_tuple %s9, %s10
  %s12 = sld [smem:[#allocation0]]
  $region117: #{decoder_rnnsearch_forward.1} parent=0
    _
  %s14 = ssub.s32 1, %s12
  %s15 = scalar_select 0, %s14, %s12
  $region1: #{decoder_rnnsearch_forward.1} parent=0
    #allocation3 [shape = 'u8[8192]{0}', space=vmem, size = 0x2000, scoped, tag = 'input window, operand 0']
    #allocation4 [shape = 's32[2]{0}', space=sflag, size = 0x8, scoped, tag = 'scoped memory for decoder_rnnsearch_forward.1']
    #allocation5 [shape = 's32[2]{0}', space=sflag, size = 0x8, scoped, tag = 'scoped memory for decoder_rnnsearch_forward.1']
    #allocation6 [shape = 'u8[16384]{0}', space=vmem, size = 0x4000, scoped, tag = 'input window, operand 1, single buffered']
    #allocation7 [shape = 's32[1]{0}', space=sflag, size = 0x4, scoped, tag = 'scoped memory for decoder_rnnsearch_forward.1']
    #allocation8 [shape = 'u8[16384]{0}', space=vmem, size = 0x4000, scoped, tag = 'input window, operand 2, single buffered']
    #allocation9 [shape = 'u8[1024]{0}', space=vmem, size = 0x400, scoped, tag = 'input window, operand 3, single buffered']
    #allocation10 [shape = 's32[1]{0}', space=sflag, size = 0x4, scoped, tag = 'scoped memory for decoder_rnnsearch_forward.1']
    #allocation11 [shape = 'u8[512]{0}', space=vmem, size = 0x400, scoped, tag = 'input window, operand 4, single buffered']
    #allocation12 [shape = 'u8[16384]{0}', space=vmem, size = 0x4000, scoped, tag = 'input window, operand 5, single buffered']
    #allocation13 [shape = 's32[1]{0}', space=sflag, size = 0x4, scoped, tag = 'scoped memory for decoder_rnnsearch_forward.1']
    #allocation14 [shape = 'u8[512]{0}', space=vmem, size = 0x400, scoped, tag = 'input window, operand 6, single buffered']
    #allocation15 [shape = 'u8[40960]{0}', space=vmem, size = 0xa000, scoped, tag = 'input window, operand 7, single buffered']
    #allocation16 [shape = 's32[1]{0}', space=sflag, size = 0x4, scoped, tag = 'scoped memory for decoder_rnnsearch_forward.1']
    #allocation17 [shape = 'u8[512]{0}', space=vmem, size = 0x400, scoped, tag = 'input window, operand 8, single buffered']
    #allocation18 [shape = 'u8[8192]{0}', space=vmem, size = 0x2000, scoped, tag = 'output window, operand 0']
    #allocation19 [shape = 'u8[1024]{0}', space=vmem, size = 0x400, scoped, tag = 'output window, operand 1, single buffered']
    #allocation20 [shape = 's32[1]{0}', space=sflag, size = 0x4, scoped, tag = 'scoped memory for decoder_rnnsearch_forward.1']
    %16 = vsyncpa [#allocation4], 0
    %s17 = scalar_lea.sflag [#allocation4], 1
    %18 = vsyncpa %s17, 0
    %19 = vsyncpa [#allocation7], 0
    %20 = vsyncpa [#allocation10], 0
    %21 = vsyncpa [#allocation13], 0
    %22 = vsyncpa [#allocation16], 0
    %23 = vsyncpa [#allocation5], 0
    %s24 = scalar_lea.sflag [#allocation5], 1
    %25 = vsyncpa %s24, 0
    %26 = vsyncpa [#allocation20], 0
    loop: start=0, step=1, limit=4
    $region2: #{decoder_rnnsearch_forward.1} parent=1 // loop_pre_header
      _
    $region3: #{decoder_rnnsearch_forward.1} parent=1 // loop_header
      %s28 = sphi 0, %s32
      %p29 = scmp.ge.s32.totalorder %s28, 4
      %s35 = sphi 0, %s47
      %s36 = sphi 0, %s43
      %s37 = sphi 0, %s35
      %s38 = sphi 0, %s36
      %s39 = sphi 0, %s37
      %s40 = sphi 0, %s38
      %s52 = sphi 0, %s54
      %s55 = sphi 0, %s52
      %s56 = sphi 0, %s55
      %s72 = sphi 0, %s56
      %s78 = sphi 0, %s80
      %s81 = sphi 0, %s78
      %s82 = sphi 0, %s81
      %s98 = sphi 0, %s82
      %s104 = sphi 0, %s106
      %s107 = sphi 0, %s104
      %s108 = sphi 0, %s107
      %s124 = sphi 0, %s108
      %s130 = sphi 0, %s132
      %s133 = sphi 0, %s130
      %s134 = sphi 0, %s133
      %s150 = sphi 0, %s134
      %s154 = sphi 0, %s154
      %s156 = sphi 0, %s154
      %s157 = sphi 0, %s156
      %s171 = sphi 0, %s157
      %s175 = sphi 0, %s175
      %s177 = sphi 0, %s175
      %s178 = sphi 0, %s177
      %s192 = sphi 0, %s178
      %s196 = sphi 0, %s196
      %s198 = sphi 0, %s196
      %s199 = sphi 0, %s198
      %s213 = sphi 0, %s199
      %s217 = sphi 0, %s217
      %s219 = sphi 0, %s217
      %s220 = sphi 0, %s219
      %s234 = sphi 0, %s220
      %s238 = sphi 0, %s238
      %s240 = sphi 0, %s238
      %s241 = sphi 0, %s240
      %s255 = sphi 0, %s241
      %s263 = sphi 0, %s265
      %s266 = sphi 0, %s263
      %s267 = sphi 0, %s266
      %s283 = sphi 0, %s267
      %s289 = sphi 0, %s291
      %s292 = sphi 0, %s289
      %s293 = sphi 0, %s292
      %s309 = sphi 0, %s293
    $region4: #{decoder_rnnsearch_forward.1} parent=1 // loop_header_branch
      %31 = sbr.rel (%p29) target = $region8
    $region5: #{decoder_rnnsearch_forward.1} parent=1 // loop_body
      %s33 = ssub.s32 %s28, 1
      %s34 = ssub.s32 %s28, 2
      %s41 = sadd.s32 1, %s36
      %p42 = scmp.ge.s32.totalorder %s41, 2
      %s43 = scalar_select %p42, 0, %s41
      %s44 = sadd.s32 1, %s35
      %s45 = scalar_select %p42, %s44, %s35
      %p46 = scmp.ge.s32.totalorder %s45, 1
      %s47 = scalar_select %p46, 0, %s45
      %s48 = ssub.s32 %s36, %s43
      %s49 = ssub.s32 %s35, %s47
      %s50 = sor.u32 %s48, %s49
      %p51 = scmp.eq.s32.totalorder %s50, 0
      %s53 = sadd.s32 %s52, 1
      %s54 = scalar_select %p51, %s52, %s53
      %p57 = pneg %p51
      %p58 = scmp.eq.s32.totalorder %s28, 1
      %p59 = por %p57, %p58
      %p60 = scmp.ne.s32.totalorder %s52, %s55
      %p61 = scmp.eq.s32.totalorder %s28, 0
      %p62 = por %p60, %p61
      %p63 = scmp.ne.s32.totalorder %s52, %s55
      %p64 = scmp.eq.s32.totalorder %s33, 1
      %p65 = por %p63, %p64
      %p66 = scmp.ne.s32.totalorder %s55, %s56
      %p67 = scmp.eq.s32.totalorder %s33, 0
      %p68 = por %p66, %p67
      %p69 = scmp.ne.s32.totalorder %s55, %s56
      %p70 = scmp.eq.s32.totalorder %s34, 1
      %p71 = por %p69, %p70
      %p73 = scmp.ne.s32.totalorder %s56, %s72
      %p74 = scmp.eq.s32.totalorder %s34, 0
      %p75 = por %p73, %p74
      %s76 = ssub.s32 %s35, %s47
      %p77 = scmp.eq.s32.totalorder %s76, 0
      %s79 = sadd.s32 %s78, 1
      %s80 = scalar_select %p77, %s78, %s79
      %p83 = pneg %p77
      %p84 = scmp.eq.s32.totalorder %s28, 1
      %p85 = por %p83, %p84
      %p86 = scmp.ne.s32.totalorder %s78, %s81
      %p87 = scmp.eq.s32.totalorder %s28, 0
      %p88 = por %p86, %p87
      %p89 = scmp.ne.s32.totalorder %s78, %s81
      %p90 = scmp.eq.s32.totalorder %s33, 1
      %p91 = por %p89, %p90
      %p92 = scmp.ne.s32.totalorder %s81, %s82
      %p93 = scmp.eq.s32.totalorder %s33, 0
      %p94 = por %p92, %p93
      %p95 = scmp.ne.s32.totalorder %s81, %s82
      %p96 = scmp.eq.s32.totalorder %s34, 1
      %p97 = por %p95, %p96
      %p99 = scmp.ne.s32.totalorder %s82, %s98
      %p100 = scmp.eq.s32.totalorder %s34, 0
      %p101 = por %p99, %p100
      %s102 = ssub.s32 %s35, %s47
      %p103 = scmp.eq.s32.totalorder %s102, 0
      %s105 = sadd.s32 %s104, 1
      %s106 = scalar_select %p103, %s104, %s105
      %p109 = pneg %p103
      %p110 = scmp.eq.s32.totalorder %s28, 1
      %p111 = por %p109, %p110
      %p112 = scmp.ne.s32.totalorder %s104, %s107
      %p113 = scmp.eq.s32.totalorder %s28, 0
      %p114 = por %p112, %p113
      %p115 = scmp.ne.s32.totalorder %s104, %s107
      %p116 = scmp.eq.s32.totalorder %s33, 1
      %p117 = por %p115, %p116
      %p118 = scmp.ne.s32.totalorder %s107, %s108
      %p119 = scmp.eq.s32.totalorder %s33, 0
      %p120 = por %p118, %p119
      %p121 = scmp.ne.s32.totalorder %s107, %s108
      %p122 = scmp.eq.s32.totalorder %s34, 1
      %p123 = por %p121, %p122
      %p125 = scmp.ne.s32.totalorder %s108, %s124
      %p126 = scmp.eq.s32.totalorder %s34, 0
      %p127 = por %p125, %p126
      %s128 = ssub.s32 %s35, %s47
      %p129 = scmp.eq.s32.totalorder %s128, 0
      %s131 = sadd.s32 %s130, 1
      %s132 = scalar_select %p129, %s130, %s131
      %p135 = pneg %p129
      %p136 = scmp.eq.s32.totalorder %s28, 1
      %p137 = por %p135, %p136
      %p138 = scmp.ne.s32.totalorder %s130, %s133
      %p139 = scmp.eq.s32.totalorder %s28, 0
      %p140 = por %p138, %p139
      %p141 = scmp.ne.s32.totalorder %s130, %s133
      %p142 = scmp.eq.s32.totalorder %s33, 1
      %p143 = por %p141, %p142
      %p144 = scmp.ne.s32.totalorder %s133, %s134
      %p145 = scmp.eq.s32.totalorder %s33, 0
      %p146 = por %p144, %p145
      %p147 = scmp.ne.s32.totalorder %s133, %s134
      %p148 = scmp.eq.s32.totalorder %s34, 1
      %p149 = por %p147, %p148
      %p151 = scmp.ne.s32.totalorder %s134, %s150
      %p152 = scmp.eq.s32.totalorder %s34, 0
      %p153 = por %p151, %p152
      %s155 = sadd.s32 %s154, 1
      %p158 = scmp.eq.s32.totalorder %s28, 1
      %p159 = scmp.ne.s32.totalorder %s154, %s156
      %p160 = scmp.eq.s32.totalorder %s28, 0
      %p161 = por %p159, %p160
      %p162 = scmp.ne.s32.totalorder %s154, %s156
      %p163 = scmp.eq.s32.totalorder %s33, 1
      %p164 = por %p162, %p163
      %p165 = scmp.ne.s32.totalorder %s156, %s157
      %p166 = scmp.eq.s32.totalorder %s33, 0
      %p167 = por %p165, %p166
      %p168 = scmp.ne.s32.totalorder %s156, %s157
      %p169 = scmp.eq.s32.totalorder %s34, 1
      %p170 = por %p168, %p169
      %p172 = scmp.ne.s32.totalorder %s157, %s171
      %p173 = scmp.eq.s32.totalorder %s34, 0
      %p174 = por %p172, %p173
      %s176 = sadd.s32 %s175, 1
      %p179 = scmp.eq.s32.totalorder %s28, 1
      %p180 = scmp.ne.s32.totalorder %s175, %s177
      %p181 = scmp.eq.s32.totalorder %s28, 0
      %p182 = por %p180, %p181
      %p183 = scmp.ne.s32.totalorder %s175, %s177
      %p184 = scmp.eq.s32.totalorder %s33, 1
      %p185 = por %p183, %p184
      %p186 = scmp.ne.s32.totalorder %s177, %s178
      %p187 = scmp.eq.s32.totalorder %s33, 0
      %p188 = por %p186, %p187
      %p189 = scmp.ne.s32.totalorder %s177, %s178
      %p190 = scmp.eq.s32.totalorder %s34, 1
      %p191 = por %p189, %p190
      %p193 = scmp.ne.s32.totalorder %s178, %s192
      %p194 = scmp.eq.s32.totalorder %s34, 0
      %p195 = por %p193, %p194
      %s197 = sadd.s32 %s196, 1
      %p200 = scmp.eq.s32.totalorder %s28, 1
      %p201 = scmp.ne.s32.totalorder %s196, %s198
      %p202 = scmp.eq.s32.totalorder %s28, 0
      %p203 = por %p201, %p202
      %p204 = scmp.ne.s32.totalorder %s196, %s198
      %p205 = scmp.eq.s32.totalorder %s33, 1
      %p206 = por %p204, %p205
      %p207 = scmp.ne.s32.totalorder %s198, %s199
      %p208 = scmp.eq.s32.totalorder %s33, 0
      %p209 = por %p207, %p208
      %p210 = scmp.ne.s32.totalorder %s198, %s199
      %p211 = scmp.eq.s32.totalorder %s34, 1
      %p212 = por %p210, %p211
      %p214 = scmp.ne.s32.totalorder %s199, %s213
      %p215 = scmp.eq.s32.totalorder %s34, 0
      %p216 = por %p214, %p215
      %s218 = sadd.s32 %s217, 1
      %p221 = scmp.eq.s32.totalorder %s28, 1
      %p222 = scmp.ne.s32.totalorder %s217, %s219
      %p223 = scmp.eq.s32.totalorder %s28, 0
      %p224 = por %p222, %p223
      %p225 = scmp.ne.s32.totalorder %s217, %s219
      %p226 = scmp.eq.s32.totalorder %s33, 1
      %p227 = por %p225, %p226
      %p228 = scmp.ne.s32.totalorder %s219, %s220
      %p229 = scmp.eq.s32.totalorder %s33, 0
      %p230 = por %p228, %p229
      %p231 = scmp.ne.s32.totalorder %s219, %s220
      %p232 = scmp.eq.s32.totalorder %s34, 1
      %p233 = por %p231, %p232
      %p235 = scmp.ne.s32.totalorder %s220, %s234
      %p236 = scmp.eq.s32.totalorder %s34, 0
      %p237 = por %p235, %p236
      %s239 = sadd.s32 %s238, 1
      %p242 = scmp.eq.s32.totalorder %s28, 1
      %p243 = scmp.ne.s32.totalorder %s238, %s240
      %p244 = scmp.eq.s32.totalorder %s28, 0
      %p245 = por %p243, %p244
      %p246 = scmp.ne.s32.totalorder %s238, %s240
      %p247 = scmp.eq.s32.totalorder %s33, 1
      %p248 = por %p246, %p247
      %p249 = scmp.ne.s32.totalorder %s240, %s241
      %p250 = scmp.eq.s32.totalorder %s33, 0
      %p251 = por %p249, %p250
      %p252 = scmp.ne.s32.totalorder %s240, %s241
      %p253 = scmp.eq.s32.totalorder %s34, 1
      %p254 = por %p252, %p253
      %p256 = scmp.ne.s32.totalorder %s241, %s255
      %p257 = scmp.eq.s32.totalorder %s34, 0
      %p258 = por %p256, %p257
      %s259 = ssub.s32 %s36, %s43
      %s260 = ssub.s32 %s35, %s47
      %s261 = sor.u32 %s259, %s260
      %p262 = scmp.eq.s32.totalorder %s261, 0
      %s264 = sadd.s32 %s263, 1
      %s265 = scalar_select %p262, %s263, %s264
      %p268 = pneg %p262
      %p269 = scmp.eq.s32.totalorder %s28, 1
      %p270 = por %p268, %p269
      %p271 = scmp.ne.s32.totalorder %s263, %s266
      %p272 = scmp.eq.s32.totalorder %s28, 0
      %p273 = por %p271, %p272
      %p274 = scmp.ne.s32.totalorder %s263, %s266
      %p275 = scmp.eq.s32.totalorder %s33, 1
      %p276 = por %p274, %p275
      %p277 = scmp.ne.s32.totalorder %s266, %s267
      %p278 = scmp.eq.s32.totalorder %s33, 0
      %p279 = por %p277, %p278
      %p280 = scmp.ne.s32.totalorder %s266, %s267
      %p281 = scmp.eq.s32.totalorder %s34, 1
      %p282 = por %p280, %p281
      %p284 = scmp.ne.s32.totalorder %s267, %s283
      %p285 = scmp.eq.s32.totalorder %s34, 0
      %p286 = por %p284, %p285
      %s287 = ssub.s32 %s35, %s47
      %p288 = scmp.eq.s32.totalorder %s287, 0
      %s290 = sadd.s32 %s289, 1
      %s291 = scalar_select %p288, %s289, %s290
      %p294 = pneg %p288
      %p295 = scmp.eq.s32.totalorder %s28, 1
      %p296 = por %p294, %p295
      %p297 = scmp.ne.s32.totalorder %s289, %s292
      %p298 = scmp.eq.s32.totalorder %s28, 0
      %p299 = por %p297, %p298
      %p300 = scmp.ne.s32.totalorder %s289, %s292
      %p301 = scmp.eq.s32.totalorder %s33, 1
      %p302 = por %p300, %p301
      %p303 = scmp.ne.s32.totalorder %s292, %s293
      %p304 = scmp.eq.s32.totalorder %s33, 0
      %p305 = por %p303, %p304
      %p306 = scmp.ne.s32.totalorder %s292, %s293
      %p307 = scmp.eq.s32.totalorder %s34, 1
      %p308 = por %p306, %p307
      %p310 = scmp.ne.s32.totalorder %s293, %s309
      %p311 = scmp.eq.s32.totalorder %s34, 0
      %p312 = por %p310, %p311
      %p313 = scmp.le.s32.totalorder 1, %s28
      %p314 = scmp.lt.s32.totalorder %s28, 3
      %p315 = pnand %p313, %p314
      %p316 = pneg %p315
      // Predicated region
      $region9: #{decoder_rnnsearch_forward.1} parent=5 // pred_check
        _
      $region10: #{decoder_rnnsearch_forward.1} parent=5 // pred_check_branch
        %318 = sbr.rel (%p315) target = $region12
      $region11: #{decoder_rnnsearch_forward.1} parent=5 // pred_region
        %s319 = ssub.s32 %s28, 1
        // Predicated region
        $region13: #{decoder_rnnsearch_forward.1} parent=11 // pred_check
          %p320 = pneg %p94
        $region14: #{decoder_rnnsearch_forward.1} parent=11 // pred_check_branch
          %322 = sbr.rel (%p320) target = $region16
        $region15: #{decoder_rnnsearch_forward.1} parent=11 // pred_region
          %s323 = smul.u32 2, %s37
          %s325 = ssub.s32 512, 512
          %326 = vsyncadd [#allocation7], %s325
          %s327 = smul.addr %s323, 2
          %s328 = smul.addr %s327, 128
          %s329 = scalar_lea.hbm %s1, %s328
          %s330 = sshll.u32 [#allocation6], 4
          %s331 = int_to_ptr.vmem [resolvable:$true] %s330
          %336 = dma.hbm_to_vmem [thread:$0]  %s329, 512, %s331, [#allocation7], 128, 128, 8
        $region16: #{decoder_rnnsearch_forward.1} parent=11 // pred_fallthru
          _
        // Predicated region
        $region17: #{decoder_rnnsearch_forward.1} parent=11 // pred_check
          %p337 = pneg %p120
        $region18: #{decoder_rnnsearch_forward.1} parent=11 // pred_check_branch
          %339 = sbr.rel (%p337) target = $region20
        $region19: #{decoder_rnnsearch_forward.1} parent=11 // pred_region
          %s340 = smul.u32 2, %s37
          %s342 = ssub.s32 512, 512
          %343 = vsyncadd [#allocation7], %s342
          %s344 = smul.addr %s340, 2
          %s345 = smul.addr %s344, 128
          %s346 = scalar_lea.hbm %s2, %s345
          %s347 = sshll.u32 [#allocation8], 4
          %s348 = int_to_ptr.vmem [resolvable:$true] %s347
          %353 = dma.hbm_to_vmem [thread:$0]  %s346, 512, %s348, [#allocation7], 128, 128, 8
        $region20: #{decoder_rnnsearch_forward.1} parent=11 // pred_fallthru
          _
        // Predicated region
        $region21: #{decoder_rnnsearch_forward.1} parent=11 // pred_check
          %p354 = pneg %p146
        $region22: #{decoder_rnnsearch_forward.1} parent=11 // pred_check_branch
          %356 = sbr.rel (%p354) target = $region24
        $region23: #{decoder_rnnsearch_forward.1} parent=11 // pred_region
          %s358 = ssub.s32 32, 32
          %359 = vsyncadd [#allocation10], %s358
          %s360 = smul.addr %s37, 32
          %s361 = scalar_lea.hbm %s3, %s360
          %s363 = sshll.u32 [#allocation9], 4
          %s364 = int_to_ptr.vmem [resolvable:$true] %s363
          %366 = dma.hbm_to_vmem [thread:$0]  %s361, 32, %s364, [#allocation10]
        $region24: #{decoder_rnnsearch_forward.1} parent=11 // pred_fallthru
          _
        // Predicated region
        $region25: #{decoder_rnnsearch_forward.1} parent=11 // pred_check
          %p367 = pneg %p167
        $region26: #{decoder_rnnsearch_forward.1} parent=11 // pred_check_branch
          %369 = sbr.rel (%p367) target = $region28
        $region27: #{decoder_rnnsearch_forward.1} parent=11 // pred_region
          %s371 = ssub.s32 16, 16
          %372 = vsyncadd [#allocation10], %s371
          %s374 = sshll.u32 [#allocation11], 4
          %s375 = int_to_ptr.vmem [resolvable:$true] %s374
          %377 = dma.hbm_to_vmem [thread:$0]  %s4, 16, %s375, [#allocation10]
        $region28: #{decoder_rnnsearch_forward.1} parent=11 // pred_fallthru
          _
        // Predicated region
        $region29: #{decoder_rnnsearch_forward.1} parent=11 // pred_check
          %p378 = pneg %p188
        $region30: #{decoder_rnnsearch_forward.1} parent=11 // pred_check_branch
          %380 = sbr.rel (%p378) target = $region32
        $region31: #{decoder_rnnsearch_forward.1} parent=11 // pred_region
          %s382 = ssub.s32 512, 512
          %383 = vsyncadd [#allocation13], %s382
          %s384 = sshll.u32 [#allocation12], 4
          %s385 = int_to_ptr.vmem [resolvable:$true] %s384
          %390 = dma.hbm_to_vmem [thread:$0]  %s5, 512, %s385, [#allocation13], 128, 128, 8
        $region32: #{decoder_rnnsearch_forward.1} parent=11 // pred_fallthru
          _
        // Predicated region
        $region33: #{decoder_rnnsearch_forward.1} parent=11 // pred_check
          %p391 = pneg %p209
        $region34: #{decoder_rnnsearch_forward.1} parent=11 // pred_check_branch
          %393 = sbr.rel (%p391) target = $region36
        $region35: #{decoder_rnnsearch_forward.1} parent=11 // pred_region
          %s395 = ssub.s32 16, 16
          %396 = vsyncadd [#allocation13], %s395
          %s398 = sshll.u32 [#allocation14], 4
          %s399 = int_to_ptr.vmem [resolvable:$true] %s398
          %401 = dma.hbm_to_vmem [thread:$0]  %s6, 16, %s399, [#allocation13]
        $region36: #{decoder_rnnsearch_forward.1} parent=11 // pred_fallthru
          _
        // Predicated region
        $region37: #{decoder_rnnsearch_forward.1} parent=11 // pred_check
          %p402 = pneg %p230
        $region38: #{decoder_rnnsearch_forward.1} parent=11 // pred_check_branch
          %404 = sbr.rel (%p402) target = $region40
        $region39: #{decoder_rnnsearch_forward.1} parent=11 // pred_region
          %s406 = ssub.s32 1280, 1280
          %407 = vsyncadd [#allocation16], %s406
          %s408 = sshll.u32 [#allocation15], 4
          %s409 = int_to_ptr.vmem [resolvable:$true] %s408
          %414 = dma.hbm_to_vmem [thread:$0]  %s7, 1280, %s409, [#allocation16], 128, 128, 8
        $region40: #{decoder_rnnsearch_forward.1} parent=11 // pred_fallthru
          _
        // Predicated region
        $region41: #{decoder_rnnsearch_forward.1} parent=11 // pred_check
          %p415 = pneg %p251
        $region42: #{decoder_rnnsearch_forward.1} parent=11 // pred_check_branch
          %417 = sbr.rel (%p415) target = $region44
        $region43: #{decoder_rnnsearch_forward.1} parent=11 // pred_region
          %s419 = ssub.s32 16, 16
          %420 = vsyncadd [#allocation16], %s419
          %s422 = sshll.u32 [#allocation17], 4
          %s423 = int_to_ptr.vmem [resolvable:$true] %s422
          %425 = dma.hbm_to_vmem [thread:$0]  %s8, 16, %s423, [#allocation16]
        $region44: #{decoder_rnnsearch_forward.1} parent=11 // pred_fallthru
          _
      $region12: #{decoder_rnnsearch_forward.1} parent=5 // pred_fallthru
        _
      %p426 = scmp.lt.s32.totalorder %s28, 2
      // Predicated region
      $region45: #{decoder_rnnsearch_forward.1} parent=5 // pred_check
        %p427 = pneg %p426
      $region46: #{decoder_rnnsearch_forward.1} parent=5 // pred_check_branch
        %429 = sbr.rel (%p427) target = $region48
      $region47: #{decoder_rnnsearch_forward.1} parent=5 // pred_region
        // Predicated region
        $region49: #{decoder_rnnsearch_forward.1} parent=47 // pred_check
          %p430 = pneg %p62
        $region50: #{decoder_rnnsearch_forward.1} parent=47 // pred_check_branch
          %432 = sbr.rel (%p430) target = $region52
        $region51: #{decoder_rnnsearch_forward.1} parent=47 // pred_region
          %s433 = sand.u32 %s52, 1
          %s434 = scalar_lea.sflag [#allocation4], %s433
          %s435 = sand.u32 %s52, 1
          %s436 = smul.addr %s435, 8
          %s437 = scalar_lea.vmem [#allocation3], %s436
          %s438 = smul.u32 4, %s36
          %s440 = ssub.s32 128, 128
          %441 = vsyncadd %s434, %s440
          %s442 = sadd.s32 %s35, %s438
          %s443 = smul.addr %s442, 32
          %s444 = scalar_lea.hbm %s0, %s443
          %s445 = sshll.u32 %s437, 4
          %s446 = int_to_ptr.vmem [resolvable:$true] %s445
          %451 = dma.hbm_to_vmem [thread:$0]  %s444, 128, %s446, %s434, 32, 32, 2
        $region52: #{decoder_rnnsearch_forward.1} parent=47 // pred_fallthru
          _
      $region48: #{decoder_rnnsearch_forward.1} parent=5 // pred_fallthru
        _
      %p452 = scmp.le.s32.totalorder 1, %s28
      %p453 = scmp.lt.s32.totalorder %s28, 3
      %p454 = pnand %p452, %p453
      %p455 = pneg %p454
      // Predicated region
      $region53: #{decoder_rnnsearch_forward.1} parent=5 // pred_check
        _
      $region54: #{decoder_rnnsearch_forward.1} parent=5 // pred_check_branch
        %457 = sbr.rel (%p454) target = $region56
      $region55: #{decoder_rnnsearch_forward.1} parent=5 // pred_region
        %s458 = ssub.s32 %s28, 1
        %s459 = sand.u32 %s55, 1
        %s460 = scalar_lea.sflag [#allocation4], %s459
        %s461 = sand.u32 %s55, 1
        %s462 = smul.addr %s461, 8
        %s463 = scalar_lea.vmem [#allocation3], %s462
        // Predicated region
        $region57: #{decoder_rnnsearch_forward.1} parent=55 // pred_check
          %p464 = pneg %p68
        $region58: #{decoder_rnnsearch_forward.1} parent=55 // pred_check_branch
          %466 = sbr.rel (%p464) target = $region60
        $region59: #{decoder_rnnsearch_forward.1} parent=55 // pred_region
          %467 = dma.done %s460, 128
        $region60: #{decoder_rnnsearch_forward.1} parent=55 // pred_fallthru
          _
        // Predicated region
        $region61: #{decoder_rnnsearch_forward.1} parent=55 // pred_check
          %p468 = pneg %p94
        $region62: #{decoder_rnnsearch_forward.1} parent=55 // pred_check_branch
          %470 = sbr.rel (%p468) target = $region64
        $region63: #{decoder_rnnsearch_forward.1} parent=55 // pred_region
          %471 = dma.done [#allocation7], 512
        $region64: #{decoder_rnnsearch_forward.1} parent=55 // pred_fallthru
          _
        // Predicated region
        $region65: #{decoder_rnnsearch_forward.1} parent=55 // pred_check
          %p472 = pneg %p120
        $region66: #{decoder_rnnsearch_forward.1} parent=55 // pred_check_branch
          %474 = sbr.rel (%p472) target = $region68
        $region67: #{decoder_rnnsearch_forward.1} parent=55 // pred_region
          %475 = dma.done [#allocation7], 512
        $region68: #{decoder_rnnsearch_forward.1} parent=55 // pred_fallthru
          _
        // Predicated region
        $region69: #{decoder_rnnsearch_forward.1} parent=55 // pred_check
          %p476 = pneg %p146
        $region70: #{decoder_rnnsearch_forward.1} parent=55 // pred_check_branch
          %478 = sbr.rel (%p476) target = $region72
        $region71: #{decoder_rnnsearch_forward.1} parent=55 // pred_region
          %479 = dma.done [#allocation10], 32
        $region72: #{decoder_rnnsearch_forward.1} parent=55 // pred_fallthru
          _
        // Predicated region
        $region73: #{decoder_rnnsearch_forward.1} parent=55 // pred_check
          %p480 = pneg %p167
        $region74: #{decoder_rnnsearch_forward.1} parent=55 // pred_check_branch
          %482 = sbr.rel (%p480) target = $region76
        $region75: #{decoder_rnnsearch_forward.1} parent=55 // pred_region
          %483 = dma.done [#allocation10], 16
        $region76: #{decoder_rnnsearch_forward.1} parent=55 // pred_fallthru
          _
        // Predicated region
        $region77: #{decoder_rnnsearch_forward.1} parent=55 // pred_check
          %p484 = pneg %p188
        $region78: #{decoder_rnnsearch_forward.1} parent=55 // pred_check_branch
          %486 = sbr.rel (%p484) target = $region80
        $region79: #{decoder_rnnsearch_forward.1} parent=55 // pred_region
          %487 = dma.done [#allocation13], 512
        $region80: #{decoder_rnnsearch_forward.1} parent=55 // pred_fallthru
          _
        // Predicated region
        $region81: #{decoder_rnnsearch_forward.1} parent=55 // pred_check
          %p488 = pneg %p209
        $region82: #{decoder_rnnsearch_forward.1} parent=55 // pred_check_branch
          %490 = sbr.rel (%p488) target = $region84
        $region83: #{decoder_rnnsearch_forward.1} parent=55 // pred_region
          %491 = dma.done [#allocation13], 16
        $region84: #{decoder_rnnsearch_forward.1} parent=55 // pred_fallthru
          _
        // Predicated region
        $region85: #{decoder_rnnsearch_forward.1} parent=55 // pred_check
          %p492 = pneg %p230
        $region86: #{decoder_rnnsearch_forward.1} parent=55 // pred_check_branch
          %494 = sbr.rel (%p492) target = $region88
        $region87: #{decoder_rnnsearch_forward.1} parent=55 // pred_region
          %495 = dma.done [#allocation16], 1280
        $region88: #{decoder_rnnsearch_forward.1} parent=55 // pred_fallthru
          _
        // Predicated region
        $region89: #{decoder_rnnsearch_forward.1} parent=55 // pred_check
          %p496 = pneg %p251
        $region90: #{decoder_rnnsearch_forward.1} parent=55 // pred_check_branch
          %498 = sbr.rel (%p496) target = $region92
        $region91: #{decoder_rnnsearch_forward.1} parent=55 // pred_region
          %499 = dma.done [#allocation16], 16
        $region92: #{decoder_rnnsearch_forward.1} parent=55 // pred_fallthru
          _
        %s500 = sand.u32 %s55, 1
        %s501 = scalar_lea.sflag [#allocation4], %s500
        %s502 = sand.u32 %s55, 1
        %s503 = smul.addr %s502, 8
        %s504 = scalar_lea.vmem [#allocation3], %s503
        %p505 = pneg %p68
        %p506 = pneg %p65
        %p507 = pneg %p94
        %p508 = pneg %p91
        %p509 = pneg %p120
        %p510 = pneg %p117
        %p511 = pneg %p146
        %p512 = pneg %p143
        %p513 = pneg %p167
        %p514 = pneg %p164
        %p515 = pneg %p188
        %p516 = pneg %p185
        %p517 = pneg %p209
        %p518 = pneg %p206
        %p519 = pneg %p230
        %p520 = pneg %p227
        %p521 = pneg %p251
        %p522 = pneg %p248
        %p523 = pneg %p279
        %p524 = pneg %p276
        %s525 = sand.u32 %s266, 1
        %s526 = scalar_lea.sflag [#allocation5], %s525
        %s527 = sand.u32 %s266, 1
        %s528 = smul.addr %s527, 8
        %s529 = scalar_lea.vmem [#allocation18], %s528
        %p530 = pneg %p305
        %p531 = pneg %p302
        %s532 = smul.u32 4, %s38
        %s533 = smul.u32 2, %s37
        %s534 = smul.u32 2, %s37
        %s535 = smul.u32 4, %s38
        %p536 = scmp.eq.s32.totalorder %s38, 0
        // Predicated region
        $region93: #{decoder_rnnsearch_forward.1} parent=55 // pred_check
          %p537 = pneg %p536
        $region94: #{decoder_rnnsearch_forward.1} parent=55 // pred_check_branch
          %539 = sbr.rel (%p537) target = $region96
        $region95: #{decoder_rnnsearch_forward.1} parent=55 // pred_region
          %v540 = vld [vmem:[#allocation9] sm:$0x3]
          %vm541 = vcmask 254976
          %542 = vst.msk [vmem:[#allocation2] sm:$0x3] %vm541, %v540
        $region96: #{decoder_rnnsearch_forward.1} parent=55 // pred_fallthru
          _
        %v543 = vld [vmem:[#allocation6] sm:$0xff]
        %v544 = vld [vmem:[#allocation6 + $0x8] sm:$0x3]
        %v545 = vld [vmem:[#allocation6 + $0x10] sm:$0xff]
        %v546 = vld [vmem:[#allocation6 + $0x18] sm:$0x3]
        %v547 = vld [vmem:[#allocation8] sm:$0xff]
        %v548 = vld [vmem:[#allocation8 + $0x8] sm:$0x3]
        %v549 = vld [vmem:[#allocation8 + $0x10] sm:$0xff]
        %v550 = vld [vmem:[#allocation8 + $0x18] sm:$0x3]
        %v551 = vld [vmem:[#allocation11] sm:$0x1]
        %v552 = vld [vmem:[#allocation12] sm:$0xff]
        %v553 = vld [vmem:[#allocation12 + $0x8] sm:$0xff]
        %v554 = vld [vmem:[#allocation12 + $0x10] sm:$0xff]
        %v555 = vld [vmem:[#allocation12 + $0x18] sm:$0xff]
        %v556 = vld [vmem:[#allocation14] sm:$0x1]
        %v557 = vld [vmem:[#allocation15] sm:$0xff]
        %v558 = vld [vmem:[#allocation15 + $0x8] sm:$0xff]
        %v559 = vld [vmem:[#allocation15 + $0x10] sm:$0xff]
        %v560 = vld [vmem:[#allocation15 + $0x18] sm:$0xff]
        %v561 = vld [vmem:[#allocation15 + $0x20] sm:$0xff]
        %v562 = vld [vmem:[#allocation15 + $0x28] sm:$0xff]
        %v563 = vld [vmem:[#allocation15 + $0x30] sm:$0xff]
        %v564 = vld [vmem:[#allocation15 + $0x38] sm:$0xff]
        %v565 = vld [vmem:[#allocation15 + $0x40] sm:$0xff]
        %v566 = vld [vmem:[#allocation15 + $0x48] sm:$0xff]
        %v567 = vld [vmem:[#allocation17] sm:$0x1]
        %v568 = vld [vmem:[#allocation2] sm:$0x3]
        %v569 = vld [vmem:[%s463] sm:$0x3]
        %v571 = vlaneseq
        %v572 = vshrl.u32 %v571, 7
        %v573 = vsub.s32 0, %v572
        %v574 = vrot.slane %v556, %v573
        %vm576 = vcmask 261120
        %v578 = vsel %vm576, %v568, 0
        %580 = vmatprep.subr.mxu0 0.0
        %581 = vmatpush1.msra.mxu0 %v552
        %582 = vmatprep.subr.mxu0 0.0
        %583 = vmatpush1.msra.mxu0 %v553
        %584 = vmatprep.subr.mxu0 0.0
        %585 = vmatpush1.msra.mxu0 %v554
        %586 = vmatprep.subr.mxu0 0.0
        %587 = vmatpush1.msra.mxu0 %v555
        %588 = vmatprep.subr.mxu0 0.0
        %589 = vmatpush1.msra.mxu0 0.0
        %590 = vmatprep.subr.mxu0 0.0
        %591 = vmatpush1.msra.mxu0 0.0
        %592 = vmatprep.subr.mxu0 0.0
        %593 = vmatpush1.msra.mxu0 0.0
        %594 = vmatprep.subr.mxu0 0.0
        %595 = vmatpush1.msra.mxu0 0.0
        %596 = vmatprep.subr.mxu0 0.0
        %597 = vmatpush1.msra.mxu0 0.0
        %598 = vmatprep.subr.mxu0 0.0
        %599 = vmatpush1.msra.mxu0 0.0
        %600 = vmatprep.subr.mxu0 0.0
        %601 = vmatpush1.msra.mxu0 0.0
        %602 = vmatprep.subr.mxu0 0.0
        %603 = vmatpush1.msra.mxu0 0.0
        %604 = vmatprep.subr.mxu0 0.0
        %605 = vmatpush1.msra.mxu0 0.0
        %606 = vmatprep.subr.mxu0 0.0
        %607 = vmatpush1.msra.mxu0 0.0
        %608 = vmatprep.subr.mxu0 0.0
        %609 = vmatpush1.msra.mxu0 0.0
        %610 = vmatprep.subr.mxu0 0.0
        %611 = vmatpush1.msra.mxu0 0.0
        %612 = vmatprep.subr.mxu0 0.0
        %613 = vmatpush1.msra.mxu0 0.0
        %614 = vmatprep.subr.mxu0 0.0
        %615 = vmatpush1.msra.mxu0 0.0
        %616 = vmatprep.subr.mxu0 0.0
        %617 = vmatpush1.msra.mxu0 0.0
        %618 = vmatprep.subr.mxu0 0.0
        %619 = vmatpush1.msra.mxu0 0.0
        %620 = vmatprep.subr.mxu0 0.0
        %621 = vmatpush1.msra.mxu0 0.0
        %622 = vmatprep.subr.mxu0 0.0
        %623 = vmatpush1.msra.mxu0 0.0
        %624 = vmatprep.subr.mxu0 0.0
        %625 = vmatpush1.msra.mxu0 0.0
        %626 = vmatprep.subr.mxu0 0.0
        %627 = vmatpush1.msra.mxu0 0.0
        %628 = vmatprep.subr.mxu0 0.0
        %629 = vmatpush1.msra.mxu0 0.0
        %630 = vmatprep.subr.mxu0 0.0
        %631 = vmatpush1.msra.mxu0 0.0
        %632 = vmatprep.subr.mxu0 0.0
        %633 = vmatpush1.msra.mxu0 0.0
        %634 = vmatprep.subr.mxu0 0.0
        %635 = vmatpush1.msra.mxu0 0.0
        %636 = vmatprep.subr.mxu0 0.0
        %637 = vmatpush1.msra.mxu0 0.0
        %638 = vmatprep.subr.mxu0 0.0
        %639 = vmatpush1.msra.mxu0 0.0
        %640 = vmatprep.subr.mxu0 0.0
        %641 = vmatpush1.msra.mxu0 0.0
        %642 = vmatprep.subr.mxu0 0.0
        %643 = vmatpush1.msra.mxu0 0.0
        %644 = vmatprep.mubr.f32.mxu0 0.0
        %645 = vmatmul.mubr.f32.gmra.mrb[0].mxu0 %v578
        %v646 = vpop.f32.mrb[0].mxu0
        %v647 = vadd.f32 %v574, %v646
        %v648 = vpop.f32.mrb[0].mxu0
        %649 = vdwg.mxu0
        %v652 = vunpack.c.l.s4 1966171168
        %v653 = vunpack.c.0.s8 %v652
        %v654 = vlaneseq
        %v655 = vshrl.u32 %v654, 7
        %v656 = vsub.s32 %v653, %v655
        %v657 = vrot.slane %v647, %v656
        %v658 = vcombine.high %v657, %v657
        %v660 = vunpack.c.l.s4 1966171168
        %v661 = vunpack.c.0.s8 %v660
        %v662 = vlaneseq
        %v663 = vshrl.u32 %v662, 7
        %v664 = vsub.s32 %v661, %v663
        %v665 = vrot.slane %v657, %v664
        %v667 = vunpack.c.l.s4 1966171168
        %v668 = vunpack.c.0.s8 %v667
        %v669 = vlaneseq
        %v670 = vshrl.u32 %v669, 7
        %v671 = vsub.s32 %v668, %v670
        %v672 = vrot.slane %v658, %v671
        %v673 = vlaneseq
        %v674 = vshrl.u32 %v673, 7
        %v675 = vsub.s32 0, %v674
        %v676 = vrot.slane %v665, %v675
        %v677 = vlaneseq
        %v678 = vshrl.u32 %v677, 7
        %v679 = vsub.s32 0, %v678
        %v680 = vrot.slane %v672, %v679
        %v683 = vadd.f32 %v676, %v543
        %v684 = vadd.f32 %v676, %v544
        %v685 = vadd.f32 %v680, %v545
        %v686 = vadd.f32 %v680, %v546
        %v687 = vtanh.pop %v683
        %v688 = vtanh.pop %v684
        %v689 = vtanh.pop %v685
        %v690 = vtanh.pop %v686
        %v692 = vlaneseq
        %v693 = vshrl.u32 %v692, 7
        %v694 = vsub.s32 0, %v693
        %v695 = vrot.slane %v551, %v694
        %v697 = vmul.f32 %v687, %v695
        %v698 = vmul.f32 %v688, %v695
        %v699 = vmul.f32 %v689, %v695
        %v700 = vmul.f32 %v690, %v695
        %v701 = vsel %vm576, %v697, 0.0
        %702 = vadd.xlane.f32.xlu0 %v701
        %v703 = vpop.xlane.xlu0 %702
        %vm704 = vcmask 254976
        %v705 = vsel %vm704, %v698, 0.0
        %706 = vadd.xlane.f32.xlu0 %v705
        %v707 = vpop.xlane.xlu0 %706
        %v708 = vsel %vm576, %v699, 0.0
        %709 = vadd.xlane.f32.xlu0 %v708
        %v710 = vpop.xlane.xlu0 %709
        %v711 = vsel %vm704, %v700, 0.0
        %712 = vadd.xlane.f32.xlu0 %v711
        %v713 = vpop.xlane.xlu0 %712
        %v718 = vlaneseq
        %v719 = vand.u32 %v718, 127
        %v720 = vlaneseq
        %v721 = vshrl.u32 %v720, 7
        %v722 = vsub.s32 %v719, %v721
        %v723 = vrot.slane %v703, %v722
        %v724 = vadd.s32 %v719, 4294967288
        %v725 = vlaneseq
        %v726 = vshrl.u32 %v725, 7
        %v727 = vsub.s32 %v724, %v726
        %v728 = vrot.slane %v707, %v727
        %vm729 = vcmask 130112
        %v730 = vsel %vm729, %v728, %v723
        %v731 = vlaneseq
        %v732 = vshrl.u32 %v731, 7
        %v733 = vsub.s32 %v719, %v732
        %v734 = vrot.slane %v710, %v733
        %v735 = vlaneseq
        %v736 = vshrl.u32 %v735, 7
        %v737 = vsub.s32 %v724, %v736
        %v738 = vrot.slane %v713, %v737
        %v739 = vsel %vm729, %v738, %v734
        %vm740 = vcmask 1041409
        %v741 = vsel %vm740, %v739, %v730
        %vm743 = vcmask 74752
        %v744 = vsel %vm743, %v741, -inf
        %745 = vmax.xlane.f32.xlu0 %v744
        %v746 = vpop.xlane.xlu0 %745
        %v748 = vlaneseq
        %v749 = vshrl.u32 %v748, 7
        %v750 = vsub.s32 0, %v749
        %v751 = vrot.slane %v746, %v750
        %v752 = vlaneseq
        %v753 = vshrl.u32 %v752, 7
        %v754 = vsub.s32 1, %v753
        %v755 = vrot.slane %v746, %v754
        %v758 = vsub.f32 %v703, %v751
        %v759 = vsub.f32 %v707, %v751
        %v760 = vsub.f32 %v710, %v755
        %v761 = vsub.f32 %v713, %v755
        %v762 = vmul.f32 %v758, 1.442695
        %v763 = vpow.pop %v762
        %v764 = vmul.f32 %v759, 1.442695
        %v765 = vpow.pop %v764
        %v766 = vmul.f32 %v760, 1.442695
        %v767 = vpow.pop %v766
        %v768 = vmul.f32 %v761, 1.442695
        %v769 = vpow.pop %v768
        %774 = vset.pattern.permute.xlu0 0
        %775 = vperm.xlu0 %774, %v763
        %v776 = vpop.permute.xlu0 %775
        %777 = vset.pattern.permute.xlu0 0
        %778 = vperm.xlu0 %777, %v765
        %v779 = vpop.permute.xlu0 %778
        %780 = vset.pattern.permute.xlu0 0
        %781 = vperm.xlu0 %780, %v767
        %v782 = vpop.permute.xlu0 %781
        %783 = vset.pattern.permute.xlu0 0
        %784 = vperm.xlu0 %783, %v769
        %v785 = vpop.permute.xlu0 %784
        %v786 = vlaneseq
        %v787 = vshrl.u32 %v786, 7
        %v788 = vsub.s32 %v719, %v787
        %v789 = vrot.slane %v776, %v788
        %v790 = vlaneseq
        %v791 = vshrl.u32 %v790, 7
        %v792 = vsub.s32 %v724, %v791
        %v793 = vrot.slane %v779, %v792
        %v794 = vsel %vm729, %v793, %v789
        %v795 = vlaneseq
        %v796 = vshrl.u32 %v795, 7
        %v797 = vsub.s32 %v719, %v796
        %v798 = vrot.slane %v782, %v797
        %v799 = vlaneseq
        %v800 = vshrl.u32 %v799, 7
        %v801 = vsub.s32 %v724, %v800
        %v802 = vrot.slane %v785, %v801
        %v803 = vsel %vm729, %v802, %v798
        %v804 = vsel %vm740, %v803, %v794
        %v806 = vsel %vm743, %v804, 0.0
        %807 = vadd.xlane.f32.xlu0 %v806
        %v808 = vpop.xlane.xlu0 %807
        %v809 = vrcp.pop %v808
        %v811 = vlaneseq
        %v812 = vshrl.u32 %v811, 7
        %v813 = vsub.s32 0, %v812
        %v814 = vrot.slane %v809, %v813
        %v815 = vlaneseq
        %v816 = vshrl.u32 %v815, 7
        %v817 = vsub.s32 1, %v816
        %v818 = vrot.slane %v809, %v817
        %v821 = vmul.f32 %v763, %v814
        %v822 = vmul.f32 %v765, %v814
        %v823 = vmul.f32 %v767, %v818
        %v824 = vmul.f32 %v769, %v818
        %826 = vset.pattern.permute.xlu0 0
        %827 = vperm.xlu0 %826, %v821
        %v828 = vpop.permute.xlu0 %827
        %831 = vset.pattern.permute.xlu0 0
        %832 = vperm.xlu0 %831, %v822
        %v833 = vpop.permute.xlu0 %832
        %836 = vset.pattern.permute.xlu0 0
        %837 = vperm.xlu0 %836, %v823
        %v838 = vpop.permute.xlu0 %837
        %841 = vset.pattern.permute.xlu0 0
        %842 = vperm.xlu0 %841, %v824
        %v843 = vpop.permute.xlu0 %842
        %v845 = vmul.f32 %v828, %v547
        %v846 = vmul.f32 %v833, %v548
        %v847 = vmul.f32 %v838, %v549
        %v848 = vmul.f32 %v843, %v550
        %vm849 = vcmask 523264
        %v850 = vsel %vm849, %v845, 0.0
        %vm851 = vcmask 517120
        %v852 = vsel %vm851, %v846, 0.0
        %v853 = vadd.f32 %v850, %v852
        %v854 = vrot.slane %v853, 4
        %v855 = vadd.f32 %v853, %v854
        %v856 = vrot.slane %v855, 2
        %v857 = vadd.f32 %v855, %v856
        %v858 = vrot.slane %v857, 1
        %v859 = vadd.f32 %v857, %v858
        %v860 = vsel %vm849, %v847, 0.0
        %v861 = vsel %vm851, %v848, 0.0
        %v862 = vadd.f32 %v860, %v861
        %v863 = vrot.slane %v862, 4
        %v864 = vadd.f32 %v862, %v863
        %v865 = vrot.slane %v864, 2
        %v866 = vadd.f32 %v864, %v865
        %v867 = vrot.slane %v866, 1
        %v868 = vadd.f32 %v866, %v867
        %v871 = vsel %vm740, %v868, %v859
        %872 = vrot.lane.b32.xlu0 %v871, 32
        %v873 = vpop.permute.xlu0 %872
        %v875 = vsel %vm576, %v568, %v873
        %vm876 = vcmask 785408
        %v877 = vsel %vm876, %v875, 0.0
        %878 = vst [vmem:[%s529] sm:$0x3] %v877
        %879 = vrot.lane.b32.xlu0 %v871, 16
        %v880 = vpop.permute.xlu0 %879
        %vm882 = vcmask 130048
        %v883 = vsel %vm882, %v569, %v880
        %v885 = vlaneseq
        %v886 = vshrl.u32 %v885, 7
        %v887 = vsub.s32 0, %v886
        %v888 = vrot.slane %v567, %v887
        %vm890 = vcmask 654336
        %v892 = vsel %vm890, %v883, 0
        %894 = vmatprep.subr.mxu0 0.0
        %895 = vmatpush1.msra.mxu0 %v557
        %896 = vmatprep.subr.mxu0 0.0
        %897 = vmatpush1.msra.mxu0 %v558
        %898 = vmatprep.subr.mxu0 0.0
        %899 = vmatpush1.msra.mxu0 %v559
        %900 = vmatprep.subr.mxu0 0.0
        %901 = vmatpush1.msra.mxu0 %v560
        %902 = vmatprep.subr.mxu0 0.0
        %903 = vmatpush1.msra.mxu0 %v561
        %904 = vmatprep.subr.mxu0 0.0
        %905 = vmatpush1.msra.mxu0 %v562
        %906 = vmatprep.subr.mxu0 0.0
        %907 = vmatpush1.msra.mxu0 %v563
        %908 = vmatprep.subr.mxu0 0.0
        %909 = vmatpush1.msra.mxu0 %v564
        %910 = vmatprep.subr.mxu0 0.0
        %911 = vmatpush1.msra.mxu0 %v565
        %912 = vmatprep.subr.mxu0 0.0
        %913 = vmatpush1.msra.mxu0 %v566
        %914 = vmatprep.subr.mxu0 0.0
        %915 = vmatpush1.msra.mxu0 0.0
        %916 = vmatprep.subr.mxu0 0.0
        %917 = vmatpush1.msra.mxu0 0.0
        %918 = vmatprep.subr.mxu0 0.0
        %919 = vmatpush1.msra.mxu0 0.0
        %920 = vmatprep.subr.mxu0 0.0
        %921 = vmatpush1.msra.mxu0 0.0
        %922 = vmatprep.subr.mxu0 0.0
        %923 = vmatpush1.msra.mxu0 0.0
        %924 = vmatprep.subr.mxu0 0.0
        %925 = vmatpush1.msra.mxu0 0.0
        %926 = vmatprep.subr.mxu0 0.0
        %927 = vmatpush1.msra.mxu0 0.0
        %928 = vmatprep.subr.mxu0 0.0
        %929 = vmatpush1.msra.mxu0 0.0
        %930 = vmatprep.subr.mxu0 0.0
        %931 = vmatpush1.msra.mxu0 0.0
        %932 = vmatprep.subr.mxu0 0.0
        %933 = vmatpush1.msra.mxu0 0.0
        %934 = vmatprep.subr.mxu0 0.0
        %935 = vmatpush1.msra.mxu0 0.0
        %936 = vmatprep.subr.mxu0 0.0
        %937 = vmatpush1.msra.mxu0 0.0
        %938 = vmatprep.subr.mxu0 0.0
        %939 = vmatpush1.msra.mxu0 0.0
        %940 = vmatprep.subr.mxu0 0.0
        %941 = vmatpush1.msra.mxu0 0.0
        %942 = vmatprep.subr.mxu0 0.0
        %943 = vmatpush1.msra.mxu0 0.0
        %944 = vmatprep.subr.mxu0 0.0
        %945 = vmatpush1.msra.mxu0 0.0
        %946 = vmatprep.subr.mxu0 0.0
        %947 = vmatpush1.msra.mxu0 0.0
        %948 = vmatprep.subr.mxu0 0.0
        %949 = vmatpush1.msra.mxu0 0.0
        %950 = vmatprep.subr.mxu0 0.0
        %951 = vmatpush1.msra.mxu0 0.0
        %952 = vmatprep.subr.mxu0 0.0
        %953 = vmatpush1.msra.mxu0 0.0
        %954 = vmatprep.subr.mxu0 0.0
        %955 = vmatpush1.msra.mxu0 0.0
        %956 = vmatprep.subr.mxu0 0.0
        %957 = vmatpush1.msra.mxu0 0.0
        %958 = vmatprep.mubr.f32.mxu0 0.0
        %959 = vmatmul.mubr.f32.gmra.mrb[0].mxu0 %v892
        %v960 = vpop.f32.mrb[0].mxu0
        %v961 = vadd.f32 %v888, %v960
        %v962 = vpop.f32.mrb[0].mxu0
        %963 = vdwg.mxu0
        %964 = vrot.lane.b32.xlu0 %v647, 96
        %v965 = vpop.permute.xlu0 %964
        %v967 = vadd.f32 %v961, %v965
        %v968 = vxor.u32 %v967, 2147483648
        %v969 = vmul.f32 %v968, 1.442695
        %v970 = vpow.pop %v969
        %v971 = vadd.f32 %v970, 1.0
        %v972 = vrcp.pop %v971
        %v973 = vmul.f32 1.0, %v972
        %974 = vrot.lane.b32.xlu0 %v647, 32
        %v975 = vpop.permute.xlu0 %974
        %v977 = vmul.f32 %v973, %v975
        %979 = vrot.lane.b32.xlu0 %v977, 64
        %v980 = vpop.permute.xlu0 %979
        %v982 = vadd.f32 %v961, %v980
        %v983 = vtanh.pop %v982
        %v984 = vsub.f32 1.0, %v973
        %986 = vrot.lane.b32.xlu0 %v983, 96
        %v987 = vpop.permute.xlu0 %986
        %v989 = vmul.f32 %v984, %v987
        %990 = vrot.lane.b32.xlu0 %v568, 32
        %v991 = vpop.permute.xlu0 %990
        %v993 = vmul.f32 %v973, %v991
        %v994 = vadd.f32 %v989, %v993
        %s995 = scalar_lea.vmem %s463, 2 [#allocation3]
        %v996 = vld [vmem:[%s995] sm:$0x3]
        %998 = vrot.lane.b32.xlu0 %v994, 96
        %v999 = vpop.permute.xlu0 %998
        %v1000 = vsel %vm576, %v999, 0
        %1002 = vmatprep.subr.mxu0 0.0
        %1003 = vmatpush1.msra.mxu0 %v552
        %1004 = vmatprep.subr.mxu0 0.0
        %1005 = vmatpush1.msra.mxu0 %v553
        %1006 = vmatprep.subr.mxu0 0.0
        %1007 = vmatpush1.msra.mxu0 %v554
        %1008 = vmatprep.subr.mxu0 0.0
        %1009 = vmatpush1.msra.mxu0 %v555
        %1010 = vmatprep.subr.mxu0 0.0
        %1011 = vmatpush1.msra.mxu0 0.0
        %1012 = vmatprep.subr.mxu0 0.0
        %1013 = vmatpush1.msra.mxu0 0.0
        %1014 = vmatprep.subr.mxu0 0.0
        %1015 = vmatpush1.msra.mxu0 0.0
        %1016 = vmatprep.subr.mxu0 0.0
        %1017 = vmatpush1.msra.mxu0 0.0
        %1018 = vmatprep.subr.mxu0 0.0
        %1019 = vmatpush1.msra.mxu0 0.0
        %1020 = vmatprep.subr.mxu0 0.0
        %1021 = vmatpush1.msra.mxu0 0.0
        %1022 = vmatprep.subr.mxu0 0.0
        %1023 = vmatpush1.msra.mxu0 0.0
        %1024 = vmatprep.subr.mxu0 0.0
        %1025 = vmatpush1.msra.mxu0 0.0
        %1026 = vmatprep.subr.mxu0 0.0
        %1027 = vmatpush1.msra.mxu0 0.0
        %1028 = vmatprep.subr.mxu0 0.0
        %1029 = vmatpush1.msra.mxu0 0.0
        %1030 = vmatprep.subr.mxu0 0.0
        %1031 = vmatpush1.msra.mxu0 0.0
        %1032 = vmatprep.subr.mxu0 0.0
        %1033 = vmatpush1.msra.mxu0 0.0
        %1034 = vmatprep.subr.mxu0 0.0
        %1035 = vmatpush1.msra.mxu0 0.0
        %1036 = vmatprep.subr.mxu0 0.0
        %1037 = vmatpush1.msra.mxu0 0.0
        %1038 = vmatprep.subr.mxu0 0.0
        %1039 = vmatpush1.msra.mxu0 0.0
        %1040 = vmatprep.subr.mxu0 0.0
        %1041 = vmatpush1.msra.mxu0 0.0
        %1042 = vmatprep.subr.mxu0 0.0
        %1043 = vmatpush1.msra.mxu0 0.0
        %1044 = vmatprep.subr.mxu0 0.0
        %1045 = vmatpush1.msra.mxu0 0.0
        %1046 = vmatprep.subr.mxu0 0.0
        %1047 = vmatpush1.msra.mxu0 0.0
        %1048 = vmatprep.subr.mxu0 0.0
        %1049 = vmatpush1.msra.mxu0 0.0
        %1050 = vmatprep.subr.mxu0 0.0
        %1051 = vmatpush1.msra.mxu0 0.0
        %1052 = vmatprep.subr.mxu0 0.0
        %1053 = vmatpush1.msra.mxu0 0.0
        %1054 = vmatprep.subr.mxu0 0.0
        %1055 = vmatpush1.msra.mxu0 0.0
        %1056 = vmatprep.subr.mxu0 0.0
        %1057 = vmatpush1.msra.mxu0 0.0
        %1058 = vmatprep.subr.mxu0 0.0
        %1059 = vmatpush1.msra.mxu0 0.0
        %1060 = vmatprep.subr.mxu0 0.0
        %1061 = vmatpush1.msra.mxu0 0.0
        %1062 = vmatprep.subr.mxu0 0.0
        %1063 = vmatpush1.msra.mxu0 0.0
        %1064 = vmatprep.subr.mxu0 0.0
        %1065 = vmatpush1.msra.mxu0 0.0
        %1066 = vmatprep.mubr.f32.mxu0 0.0
        %1067 = vmatmul.mubr.f32.gmra.mrb[0].mxu0 %v1000
        %v1068 = vpop.f32.mrb[0].mxu0
        %v1069 = vadd.f32 %v574, %v1068
        %v1070 = vpop.f32.mrb[0].mxu0
        %1071 = vdwg.mxu0
        %v1074 = vunpack.c.l.s4 1966171168
        %v1075 = vunpack.c.0.s8 %v1074
        %v1076 = vlaneseq
        %v1077 = vshrl.u32 %v1076, 7
        %v1078 = vsub.s32 %v1075, %v1077
        %v1079 = vrot.slane %v1069, %v1078
        %v1080 = vcombine.high %v1079, %v1079
        %v1082 = vunpack.c.l.s4 1966171168
        %v1083 = vunpack.c.0.s8 %v1082
        %v1084 = vlaneseq
        %v1085 = vshrl.u32 %v1084, 7
        %v1086 = vsub.s32 %v1083, %v1085
        %v1087 = vrot.slane %v1079, %v1086
        %v1089 = vunpack.c.l.s4 1966171168
        %v1090 = vunpack.c.0.s8 %v1089
        %v1091 = vlaneseq
        %v1092 = vshrl.u32 %v1091, 7
        %v1093 = vsub.s32 %v1090, %v1092
        %v1094 = vrot.slane %v1080, %v1093
        %v1095 = vlaneseq
        %v1096 = vshrl.u32 %v1095, 7
        %v1097 = vsub.s32 0, %v1096
        %v1098 = vrot.slane %v1087, %v1097
        %v1099 = vlaneseq
        %v1100 = vshrl.u32 %v1099, 7
        %v1101 = vsub.s32 0, %v1100
        %v1102 = vrot.slane %v1094, %v1101
        %v1105 = vadd.f32 %v1098, %v543
        %v1106 = vadd.f32 %v1098, %v544
        %v1107 = vadd.f32 %v1102, %v545
        %v1108 = vadd.f32 %v1102, %v546
        %v1109 = vtanh.pop %v1105
        %v1110 = vtanh.pop %v1106
        %v1111 = vtanh.pop %v1107
        %v1112 = vtanh.pop %v1108
        %v1113 = vmul.f32 %v1109, %v695
        %v1114 = vmul.f32 %v1110, %v695
        %v1115 = vmul.f32 %v1111, %v695
        %v1116 = vmul.f32 %v1112, %v695
        %v1117 = vsel %vm576, %v1113, 0.0
        %1118 = vadd.xlane.f32.xlu0 %v1117
        %v1119 = vpop.xlane.xlu0 %1118
        %v1120 = vsel %vm704, %v1114, 0.0
        %1121 = vadd.xlane.f32.xlu0 %v1120
        %v1122 = vpop.xlane.xlu0 %1121
        %v1123 = vsel %vm576, %v1115, 0.0
        %1124 = vadd.xlane.f32.xlu0 %v1123
        %v1125 = vpop.xlane.xlu0 %1124
        %v1126 = vsel %vm704, %v1116, 0.0
        %1127 = vadd.xlane.f32.xlu0 %v1126
        %v1128 = vpop.xlane.xlu0 %1127
        %v1133 = vlaneseq
        %v1134 = vshrl.u32 %v1133, 7
        %v1135 = vsub.s32 %v719, %v1134
        %v1136 = vrot.slane %v1119, %v1135
        %v1137 = vlaneseq
        %v1138 = vshrl.u32 %v1137, 7
        %v1139 = vsub.s32 %v724, %v1138
        %v1140 = vrot.slane %v1122, %v1139
        %v1141 = vsel %vm729, %v1140, %v1136
        %v1142 = vlaneseq
        %v1143 = vshrl.u32 %v1142, 7
        %v1144 = vsub.s32 %v719, %v1143
        %v1145 = vrot.slane %v1125, %v1144
        %v1146 = vlaneseq
        %v1147 = vshrl.u32 %v1146, 7
        %v1148 = vsub.s32 %v724, %v1147
        %v1149 = vrot.slane %v1128, %v1148
        %v1150 = vsel %vm729, %v1149, %v1145
        %v1151 = vsel %vm740, %v1150, %v1141
        %v1153 = vsel %vm743, %v1151, -inf
        %1154 = vmax.xlane.f32.xlu0 %v1153
        %v1155 = vpop.xlane.xlu0 %1154
        %v1157 = vlaneseq
        %v1158 = vshrl.u32 %v1157, 7
        %v1159 = vsub.s32 0, %v1158
        %v1160 = vrot.slane %v1155, %v1159
        %v1161 = vlaneseq
        %v1162 = vshrl.u32 %v1161, 7
        %v1163 = vsub.s32 1, %v1162
        %v1164 = vrot.slane %v1155, %v1163
        %v1167 = vsub.f32 %v1119, %v1160
        %v1168 = vsub.f32 %v1122, %v1160
        %v1169 = vsub.f32 %v1125, %v1164
        %v1170 = vsub.f32 %v1128, %v1164
        %v1171 = vmul.f32 %v1167, 1.442695
        %v1172 = vpow.pop %v1171
        %v1173 = vmul.f32 %v1168, 1.442695
        %v1174 = vpow.pop %v1173
        %v1175 = vmul.f32 %v1169, 1.442695
        %v1176 = vpow.pop %v1175
        %v1177 = vmul.f32 %v1170, 1.442695
        %v1178 = vpow.pop %v1177
        %1183 = vset.pattern.permute.xlu0 0
        %1184 = vperm.xlu0 %1183, %v1172
        %v1185 = vpop.permute.xlu0 %1184
        %1186 = vset.pattern.permute.xlu0 0
        %1187 = vperm.xlu0 %1186, %v1174
        %v1188 = vpop.permute.xlu0 %1187
        %1189 = vset.pattern.permute.xlu0 0
        %1190 = vperm.xlu0 %1189, %v1176
        %v1191 = vpop.permute.xlu0 %1190
        %1192 = vset.pattern.permute.xlu0 0
        %1193 = vperm.xlu0 %1192, %v1178
        %v1194 = vpop.permute.xlu0 %1193
        %v1195 = vlaneseq
        %v1196 = vshrl.u32 %v1195, 7
        %v1197 = vsub.s32 %v719, %v1196
        %v1198 = vrot.slane %v1185, %v1197
        %v1199 = vlaneseq
        %v1200 = vshrl.u32 %v1199, 7
        %v1201 = vsub.s32 %v724, %v1200
        %v1202 = vrot.slane %v1188, %v1201
        %v1203 = vsel %vm729, %v1202, %v1198
        %v1204 = vlaneseq
        %v1205 = vshrl.u32 %v1204, 7
        %v1206 = vsub.s32 %v719, %v1205
        %v1207 = vrot.slane %v1191, %v1206
        %v1208 = vlaneseq
        %v1209 = vshrl.u32 %v1208, 7
        %v1210 = vsub.s32 %v724, %v1209
        %v1211 = vrot.slane %v1194, %v1210
        %v1212 = vsel %vm729, %v1211, %v1207
        %v1213 = vsel %vm740, %v1212, %v1203
        %v1215 = vsel %vm743, %v1213, 0.0
        %1216 = vadd.xlane.f32.xlu0 %v1215
        %v1217 = vpop.xlane.xlu0 %1216
        %v1218 = vrcp.pop %v1217
        %v1220 = vlaneseq
        %v1221 = vshrl.u32 %v1220, 7
        %v1222 = vsub.s32 0, %v1221
        %v1223 = vrot.slane %v1218, %v1222
        %v1224 = vlaneseq
        %v1225 = vshrl.u32 %v1224, 7
        %v1226 = vsub.s32 1, %v1225
        %v1227 = vrot.slane %v1218, %v1226
        %v1230 = vmul.f32 %v1172, %v1223
        %v1231 = vmul.f32 %v1174, %v1223
        %v1232 = vmul.f32 %v1176, %v1227
        %v1233 = vmul.f32 %v1178, %v1227
        %1235 = vset.pattern.permute.xlu0 0
        %1236 = vperm.xlu0 %1235, %v1230
        %v1237 = vpop.permute.xlu0 %1236
        %1240 = vset.pattern.permute.xlu0 0
        %1241 = vperm.xlu0 %1240, %v1231
        %v1242 = vpop.permute.xlu0 %1241
        %1245 = vset.pattern.permute.xlu0 0
        %1246 = vperm.xlu0 %1245, %v1232
        %v1247 = vpop.permute.xlu0 %1246
        %1250 = vset.pattern.permute.xlu0 0
        %1251 = vperm.xlu0 %1250, %v1233
        %v1252 = vpop.permute.xlu0 %1251
        %v1254 = vmul.f32 %v1237, %v547
        %v1255 = vmul.f32 %v1242, %v548
        %v1256 = vmul.f32 %v1247, %v549
        %v1257 = vmul.f32 %v1252, %v550
        %v1258 = vsel %vm849, %v1254, 0.0
        %v1259 = vsel %vm851, %v1255, 0.0
        %v1260 = vadd.f32 %v1258, %v1259
        %v1261 = vrot.slane %v1260, 4
        %v1262 = vadd.f32 %v1260, %v1261
        %v1263 = vrot.slane %v1262, 2
        %v1264 = vadd.f32 %v1262, %v1263
        %v1265 = vrot.slane %v1264, 1
        %v1266 = vadd.f32 %v1264, %v1265
        %v1267 = vsel %vm849, %v1256, 0.0
        %v1268 = vsel %vm851, %v1257, 0.0
        %v1269 = vadd.f32 %v1267, %v1268
        %v1270 = vrot.slane %v1269, 4
        %v1271 = vadd.f32 %v1269, %v1270
        %v1272 = vrot.slane %v1271, 2
        %v1273 = vadd.f32 %v1271, %v1272
        %v1274 = vrot.slane %v1273, 1
        %v1275 = vadd.f32 %v1273, %v1274
        %v1279 = vsel %vm740, %v1275, %v1266
        %1280 = vrot.lane.b32.xlu0 %v1279, 32
        %v1281 = vpop.permute.xlu0 %1280
        %v1283 = vsel %vm576, %v999, %v1281
        %v1284 = vsel %vm876, %v1283, 0.0
        %s1285 = scalar_lea.vmem %s529, 2 [#allocation18]
        %1286 = vst [vmem:[%s1285] sm:$0x3] %v1284
        %1287 = vrot.lane.b32.xlu0 %v1279, 16
        %v1288 = vpop.permute.xlu0 %1287
        %v1290 = vsel %vm882, %v996, %v1288
        %v1292 = vsel %vm890, %v1290, 0
        %1294 = vmatprep.subr.mxu0 0.0
        %1295 = vmatpush1.msra.mxu0 %v557
        %1296 = vmatprep.subr.mxu0 0.0
        %1297 = vmatpush1.msra.mxu0 %v558
        %1298 = vmatprep.subr.mxu0 0.0
        %1299 = vmatpush1.msra.mxu0 %v559
        %1300 = vmatprep.subr.mxu0 0.0
        %1301 = vmatpush1.msra.mxu0 %v560
        %1302 = vmatprep.subr.mxu0 0.0
        %1303 = vmatpush1.msra.mxu0 %v561
        %1304 = vmatprep.subr.mxu0 0.0
        %1305 = vmatpush1.msra.mxu0 %v562
        %1306 = vmatprep.subr.mxu0 0.0
        %1307 = vmatpush1.msra.mxu0 %v563
        %1308 = vmatprep.subr.mxu0 0.0
        %1309 = vmatpush1.msra.mxu0 %v564
        %1310 = vmatprep.subr.mxu0 0.0
        %1311 = vmatpush1.msra.mxu0 %v565
        %1312 = vmatprep.subr.mxu0 0.0
        %1313 = vmatpush1.msra.mxu0 %v566
        %1314 = vmatprep.subr.mxu0 0.0
        %1315 = vmatpush1.msra.mxu0 0.0
        %1316 = vmatprep.subr.mxu0 0.0
        %1317 = vmatpush1.msra.mxu0 0.0
        %1318 = vmatprep.subr.mxu0 0.0
        %1319 = vmatpush1.msra.mxu0 0.0
        %1320 = vmatprep.subr.mxu0 0.0
        %1321 = vmatpush1.msra.mxu0 0.0
        %1322 = vmatprep.subr.mxu0 0.0
        %1323 = vmatpush1.msra.mxu0 0.0
        %1324 = vmatprep.subr.mxu0 0.0
        %1325 = vmatpush1.msra.mxu0 0.0
        %1326 = vmatprep.subr.mxu0 0.0
        %1327 = vmatpush1.msra.mxu0 0.0
        %1328 = vmatprep.subr.mxu0 0.0
        %1329 = vmatpush1.msra.mxu0 0.0
        %1330 = vmatprep.subr.mxu0 0.0
        %1331 = vmatpush1.msra.mxu0 0.0
        %1332 = vmatprep.subr.mxu0 0.0
        %1333 = vmatpush1.msra.mxu0 0.0
        %1334 = vmatprep.subr.mxu0 0.0
        %1335 = vmatpush1.msra.mxu0 0.0
        %1336 = vmatprep.subr.mxu0 0.0
        %1337 = vmatpush1.msra.mxu0 0.0
        %1338 = vmatprep.subr.mxu0 0.0
        %1339 = vmatpush1.msra.mxu0 0.0
        %1340 = vmatprep.subr.mxu0 0.0
        %1341 = vmatpush1.msra.mxu0 0.0
        %1342 = vmatprep.subr.mxu0 0.0
        %1343 = vmatpush1.msra.mxu0 0.0
        %1344 = vmatprep.subr.mxu0 0.0
        %1345 = vmatpush1.msra.mxu0 0.0
        %1346 = vmatprep.subr.mxu0 0.0
        %1347 = vmatpush1.msra.mxu0 0.0
        %1348 = vmatprep.subr.mxu0 0.0
        %1349 = vmatpush1.msra.mxu0 0.0
        %1350 = vmatprep.subr.mxu0 0.0
        %1351 = vmatpush1.msra.mxu0 0.0
        %1352 = vmatprep.subr.mxu0 0.0
        %1353 = vmatpush1.msra.mxu0 0.0
        %1354 = vmatprep.subr.mxu0 0.0
        %1355 = vmatpush1.msra.mxu0 0.0
        %1356 = vmatprep.subr.mxu0 0.0
        %1357 = vmatpush1.msra.mxu0 0.0
        %1358 = vmatprep.mubr.f32.mxu0 0.0
        %1359 = vmatmul.mubr.f32.gmra.mrb[0].mxu0 %v1292
        %v1360 = vpop.f32.mrb[0].mxu0
        %v1361 = vadd.f32 %v888, %v1360
        %v1362 = vpop.f32.mrb[0].mxu0
        %1363 = vdwg.mxu0
        %1364 = vrot.lane.b32.xlu0 %v1069, 96
        %v1365 = vpop.permute.xlu0 %1364
        %v1367 = vadd.f32 %v1361, %v1365
        %v1368 = vxor.u32 %v1367, 2147483648
        %v1369 = vmul.f32 %v1368, 1.442695
        %v1370 = vpow.pop %v1369
        %v1371 = vadd.f32 %v1370, 1.0
        %v1372 = vrcp.pop %v1371
        %v1373 = vmul.f32 1.0, %v1372
        %1374 = vrot.lane.b32.xlu0 %v1069, 32
        %v1375 = vpop.permute.xlu0 %1374
        %v1377 = vmul.f32 %v1373, %v1375
        %1379 = vrot.lane.b32.xlu0 %v1377, 64
        %v1380 = vpop.permute.xlu0 %1379
        %v1382 = vadd.f32 %v1361, %v1380
        %v1383 = vtanh.pop %v1382
        %v1384 = vsub.f32 1.0, %v1373
        %1386 = vrot.lane.b32.xlu0 %v1383, 96
        %v1387 = vpop.permute.xlu0 %1386
        %v1389 = vmul.f32 %v1384, %v1387
        %v1390 = vmul.f32 %v1373, %v994
        %v1391 = vadd.f32 %v1389, %v1390
        %s1392 = scalar_lea.vmem %s463, 4 [#allocation3]
        %v1393 = vld [vmem:[%s1392] sm:$0x3]
        %1395 = vrot.lane.b32.xlu0 %v1391, 96
        %v1396 = vpop.permute.xlu0 %1395
        %v1397 = vsel %vm576, %v1396, 0
        %1399 = vmatprep.subr.mxu0 0.0
        %1400 = vmatpush1.msra.mxu0 %v552
        %1401 = vmatprep.subr.mxu0 0.0
        %1402 = vmatpush1.msra.mxu0 %v553
        %1403 = vmatprep.subr.mxu0 0.0
        %1404 = vmatpush1.msra.mxu0 %v554
        %1405 = vmatprep.subr.mxu0 0.0
        %1406 = vmatpush1.msra.mxu0 %v555
        %1407 = vmatprep.subr.mxu0 0.0
        %1408 = vmatpush1.msra.mxu0 0.0
        %1409 = vmatprep.subr.mxu0 0.0
        %1410 = vmatpush1.msra.mxu0 0.0
        %1411 = vmatprep.subr.mxu0 0.0
        %1412 = vmatpush1.msra.mxu0 0.0
        %1413 = vmatprep.subr.mxu0 0.0
        %1414 = vmatpush1.msra.mxu0 0.0
        %1415 = vmatprep.subr.mxu0 0.0
        %1416 = vmatpush1.msra.mxu0 0.0
        %1417 = vmatprep.subr.mxu0 0.0
        %1418 = vmatpush1.msra.mxu0 0.0
        %1419 = vmatprep.subr.mxu0 0.0
        %1420 = vmatpush1.msra.mxu0 0.0
        %1421 = vmatprep.subr.mxu0 0.0
        %1422 = vmatpush1.msra.mxu0 0.0
        %1423 = vmatprep.subr.mxu0 0.0
        %1424 = vmatpush1.msra.mxu0 0.0
        %1425 = vmatprep.subr.mxu0 0.0
        %1426 = vmatpush1.msra.mxu0 0.0
        %1427 = vmatprep.subr.mxu0 0.0
        %1428 = vmatpush1.msra.mxu0 0.0
        %1429 = vmatprep.subr.mxu0 0.0
        %1430 = vmatpush1.msra.mxu0 0.0
        %1431 = vmatprep.subr.mxu0 0.0
        %1432 = vmatpush1.msra.mxu0 0.0
        %1433 = vmatprep.subr.mxu0 0.0
        %1434 = vmatpush1.msra.mxu0 0.0
        %1435 = vmatprep.subr.mxu0 0.0
        %1436 = vmatpush1.msra.mxu0 0.0
        %1437 = vmatprep.subr.mxu0 0.0
        %1438 = vmatpush1.msra.mxu0 0.0
        %1439 = vmatprep.subr.mxu0 0.0
        %1440 = vmatpush1.msra.mxu0 0.0
        %1441 = vmatprep.subr.mxu0 0.0
        %1442 = vmatpush1.msra.mxu0 0.0
        %1443 = vmatprep.subr.mxu0 0.0
        %1444 = vmatpush1.msra.mxu0 0.0
        %1445 = vmatprep.subr.mxu0 0.0
        %1446 = vmatpush1.msra.mxu0 0.0
        %1447 = vmatprep.subr.mxu0 0.0
        %1448 = vmatpush1.msra.mxu0 0.0
        %1449 = vmatprep.subr.mxu0 0.0
        %1450 = vmatpush1.msra.mxu0 0.0
        %1451 = vmatprep.subr.mxu0 0.0
        %1452 = vmatpush1.msra.mxu0 0.0
        %1453 = vmatprep.subr.mxu0 0.0
        %1454 = vmatpush1.msra.mxu0 0.0
        %1455 = vmatprep.subr.mxu0 0.0
        %1456 = vmatpush1.msra.mxu0 0.0
        %1457 = vmatprep.subr.mxu0 0.0
        %1458 = vmatpush1.msra.mxu0 0.0
        %1459 = vmatprep.subr.mxu0 0.0
        %1460 = vmatpush1.msra.mxu0 0.0
        %1461 = vmatprep.subr.mxu0 0.0
        %1462 = vmatpush1.msra.mxu0 0.0
        %1463 = vmatprep.mubr.f32.mxu0 0.0
        %1464 = vmatmul.mubr.f32.gmra.mrb[0].mxu0 %v1397
        %v1465 = vpop.f32.mrb[0].mxu0
        %v1466 = vadd.f32 %v574, %v1465
        %v1467 = vpop.f32.mrb[0].mxu0
        %1468 = vdwg.mxu0
        %v1471 = vunpack.c.l.s4 1966171168
        %v1472 = vunpack.c.0.s8 %v1471
        %v1473 = vlaneseq
        %v1474 = vshrl.u32 %v1473, 7
        %v1475 = vsub.s32 %v1472, %v1474
        %v1476 = vrot.slane %v1466, %v1475
        %v1477 = vcombine.high %v1476, %v1476
        %v1479 = vunpack.c.l.s4 1966171168
        %v1480 = vunpack.c.0.s8 %v1479
        %v1481 = vlaneseq
        %v1482 = vshrl.u32 %v1481, 7
        %v1483 = vsub.s32 %v1480, %v1482
        %v1484 = vrot.slane %v1476, %v1483
        %v1486 = vunpack.c.l.s4 1966171168
        %v1487 = vunpack.c.0.s8 %v1486
        %v1488 = vlaneseq
        %v1489 = vshrl.u32 %v1488, 7
        %v1490 = vsub.s32 %v1487, %v1489
        %v1491 = vrot.slane %v1477, %v1490
        %v1492 = vlaneseq
        %v1493 = vshrl.u32 %v1492, 7
        %v1494 = vsub.s32 0, %v1493
        %v1495 = vrot.slane %v1484, %v1494
        %v1496 = vlaneseq
        %v1497 = vshrl.u32 %v1496, 7
        %v1498 = vsub.s32 0, %v1497
        %v1499 = vrot.slane %v1491, %v1498
        %v1502 = vadd.f32 %v1495, %v543
        %v1503 = vadd.f32 %v1495, %v544
        %v1504 = vadd.f32 %v1499, %v545
        %v1505 = vadd.f32 %v1499, %v546
        %v1506 = vtanh.pop %v1502
        %v1507 = vtanh.pop %v1503
        %v1508 = vtanh.pop %v1504
        %v1509 = vtanh.pop %v1505
        %v1510 = vmul.f32 %v1506, %v695
        %v1511 = vmul.f32 %v1507, %v695
        %v1512 = vmul.f32 %v1508, %v695
        %v1513 = vmul.f32 %v1509, %v695
        %v1514 = vsel %vm576, %v1510, 0.0
        %1515 = vadd.xlane.f32.xlu0 %v1514
        %v1516 = vpop.xlane.xlu0 %1515
        %v1517 = vsel %vm704, %v1511, 0.0
        %1518 = vadd.xlane.f32.xlu0 %v1517
        %v1519 = vpop.xlane.xlu0 %1518
        %v1520 = vsel %vm576, %v1512, 0.0
        %1521 = vadd.xlane.f32.xlu0 %v1520
        %v1522 = vpop.xlane.xlu0 %1521
        %v1523 = vsel %vm704, %v1513, 0.0
        %1524 = vadd.xlane.f32.xlu0 %v1523
        %v1525 = vpop.xlane.xlu0 %1524
        %v1530 = vlaneseq
        %v1531 = vshrl.u32 %v1530, 7
        %v1532 = vsub.s32 %v719, %v1531
        %v1533 = vrot.slane %v1516, %v1532
        %v1534 = vlaneseq
        %v1535 = vshrl.u32 %v1534, 7
        %v1536 = vsub.s32 %v724, %v1535
        %v1537 = vrot.slane %v1519, %v1536
        %v1538 = vsel %vm729, %v1537, %v1533
        %v1539 = vlaneseq
        %v1540 = vshrl.u32 %v1539, 7
        %v1541 = vsub.s32 %v719, %v1540
        %v1542 = vrot.slane %v1522, %v1541
        %v1543 = vlaneseq
        %v1544 = vshrl.u32 %v1543, 7
        %v1545 = vsub.s32 %v724, %v1544
        %v1546 = vrot.slane %v1525, %v1545
        %v1547 = vsel %vm729, %v1546, %v1542
        %v1548 = vsel %vm740, %v1547, %v1538
        %v1550 = vsel %vm743, %v1548, -inf
        %1551 = vmax.xlane.f32.xlu0 %v1550
        %v1552 = vpop.xlane.xlu0 %1551
        %v1554 = vlaneseq
        %v1555 = vshrl.u32 %v1554, 7
        %v1556 = vsub.s32 0, %v1555
        %v1557 = vrot.slane %v1552, %v1556
        %v1558 = vlaneseq
        %v1559 = vshrl.u32 %v1558, 7
        %v1560 = vsub.s32 1, %v1559
        %v1561 = vrot.slane %v1552, %v1560
        %v1564 = vsub.f32 %v1516, %v1557
        %v1565 = vsub.f32 %v1519, %v1557
        %v1566 = vsub.f32 %v1522, %v1561
        %v1567 = vsub.f32 %v1525, %v1561
        %v1568 = vmul.f32 %v1564, 1.442695
        %v1569 = vpow.pop %v1568
        %v1570 = vmul.f32 %v1565, 1.442695
        %v1571 = vpow.pop %v1570
        %v1572 = vmul.f32 %v1566, 1.442695
        %v1573 = vpow.pop %v1572
        %v1574 = vmul.f32 %v1567, 1.442695
        %v1575 = vpow.pop %v1574
        %1580 = vset.pattern.permute.xlu0 0
        %1581 = vperm.xlu0 %1580, %v1569
        %v1582 = vpop.permute.xlu0 %1581
        %1583 = vset.pattern.permute.xlu0 0
        %1584 = vperm.xlu0 %1583, %v1571
        %v1585 = vpop.permute.xlu0 %1584
        %1586 = vset.pattern.permute.xlu0 0
        %1587 = vperm.xlu0 %1586, %v1573
        %v1588 = vpop.permute.xlu0 %1587
        %1589 = vset.pattern.permute.xlu0 0
        %1590 = vperm.xlu0 %1589, %v1575
        %v1591 = vpop.permute.xlu0 %1590
        %v1592 = vlaneseq
        %v1593 = vshrl.u32 %v1592, 7
        %v1594 = vsub.s32 %v719, %v1593
        %v1595 = vrot.slane %v1582, %v1594
        %v1596 = vlaneseq
        %v1597 = vshrl.u32 %v1596, 7
        %v1598 = vsub.s32 %v724, %v1597
        %v1599 = vrot.slane %v1585, %v1598
        %v1600 = vsel %vm729, %v1599, %v1595
        %v1601 = vlaneseq
        %v1602 = vshrl.u32 %v1601, 7
        %v1603 = vsub.s32 %v719, %v1602
        %v1604 = vrot.slane %v1588, %v1603
        %v1605 = vlaneseq
        %v1606 = vshrl.u32 %v1605, 7
        %v1607 = vsub.s32 %v724, %v1606
        %v1608 = vrot.slane %v1591, %v1607
        %v1609 = vsel %vm729, %v1608, %v1604
        %v1610 = vsel %vm740, %v1609, %v1600
        %v1612 = vsel %vm743, %v1610, 0.0
        %1613 = vadd.xlane.f32.xlu0 %v1612
        %v1614 = vpop.xlane.xlu0 %1613
        %v1615 = vrcp.pop %v1614
        %v1617 = vlaneseq
        %v1618 = vshrl.u32 %v1617, 7
        %v1619 = vsub.s32 0, %v1618
        %v1620 = vrot.slane %v1615, %v1619
        %v1621 = vlaneseq
        %v1622 = vshrl.u32 %v1621, 7
        %v1623 = vsub.s32 1, %v1622
        %v1624 = vrot.slane %v1615, %v1623
        %v1627 = vmul.f32 %v1569, %v1620
        %v1628 = vmul.f32 %v1571, %v1620
        %v1629 = vmul.f32 %v1573, %v1624
        %v1630 = vmul.f32 %v1575, %v1624
        %1632 = vset.pattern.permute.xlu0 0
        %1633 = vperm.xlu0 %1632, %v1627
        %v1634 = vpop.permute.xlu0 %1633
        %1637 = vset.pattern.permute.xlu0 0
        %1638 = vperm.xlu0 %1637, %v1628
        %v1639 = vpop.permute.xlu0 %1638
        %1642 = vset.pattern.permute.xlu0 0
        %1643 = vperm.xlu0 %1642, %v1629
        %v1644 = vpop.permute.xlu0 %1643
        %1647 = vset.pattern.permute.xlu0 0
        %1648 = vperm.xlu0 %1647, %v1630
        %v1649 = vpop.permute.xlu0 %1648
        %v1651 = vmul.f32 %v1634, %v547
        %v1652 = vmul.f32 %v1639, %v548
        %v1653 = vmul.f32 %v1644, %v549
        %v1654 = vmul.f32 %v1649, %v550
        %v1655 = vsel %vm849, %v1651, 0.0
        %v1656 = vsel %vm851, %v1652, 0.0
        %v1657 = vadd.f32 %v1655, %v1656
        %v1658 = vrot.slane %v1657, 4
        %v1659 = vadd.f32 %v1657, %v1658
        %v1660 = vrot.slane %v1659, 2
        %v1661 = vadd.f32 %v1659, %v1660
        %v1662 = vrot.slane %v1661, 1
        %v1663 = vadd.f32 %v1661, %v1662
        %v1664 = vsel %vm849, %v1653, 0.0
        %v1665 = vsel %vm851, %v1654, 0.0
        %v1666 = vadd.f32 %v1664, %v1665
        %v1667 = vrot.slane %v1666, 4
        %v1668 = vadd.f32 %v1666, %v1667
        %v1669 = vrot.slane %v1668, 2
        %v1670 = vadd.f32 %v1668, %v1669
        %v1671 = vrot.slane %v1670, 1
        %v1672 = vadd.f32 %v1670, %v1671
        %v1676 = vsel %vm740, %v1672, %v1663
        %1677 = vrot.lane.b32.xlu0 %v1676, 32
        %v1678 = vpop.permute.xlu0 %1677
        %v1680 = vsel %vm576, %v1396, %v1678
        %v1681 = vsel %vm876, %v1680, 0.0
        %s1682 = scalar_lea.vmem %s529, 4 [#allocation18]
        %1683 = vst [vmem:[%s1682] sm:$0x3] %v1681
        %1684 = vrot.lane.b32.xlu0 %v1676, 16
        %v1685 = vpop.permute.xlu0 %1684
        %v1687 = vsel %vm882, %v1393, %v1685
        %v1689 = vsel %vm890, %v1687, 0
        %1691 = vmatprep.subr.mxu0 0.0
        %1692 = vmatpush1.msra.mxu0 %v557
        %1693 = vmatprep.subr.mxu0 0.0
        %1694 = vmatpush1.msra.mxu0 %v558
        %1695 = vmatprep.subr.mxu0 0.0
        %1696 = vmatpush1.msra.mxu0 %v559
        %1697 = vmatprep.subr.mxu0 0.0
        %1698 = vmatpush1.msra.mxu0 %v560
        %1699 = vmatprep.subr.mxu0 0.0
        %1700 = vmatpush1.msra.mxu0 %v561
        %1701 = vmatprep.subr.mxu0 0.0
        %1702 = vmatpush1.msra.mxu0 %v562
        %1703 = vmatprep.subr.mxu0 0.0
        %1704 = vmatpush1.msra.mxu0 %v563
        %1705 = vmatprep.subr.mxu0 0.0
        %1706 = vmatpush1.msra.mxu0 %v564
        %1707 = vmatprep.subr.mxu0 0.0
        %1708 = vmatpush1.msra.mxu0 %v565
        %1709 = vmatprep.subr.mxu0 0.0
        %1710 = vmatpush1.msra.mxu0 %v566
        %1711 = vmatprep.subr.mxu0 0.0
        %1712 = vmatpush1.msra.mxu0 0.0
        %1713 = vmatprep.subr.mxu0 0.0
        %1714 = vmatpush1.msra.mxu0 0.0
        %1715 = vmatprep.subr.mxu0 0.0
        %1716 = vmatpush1.msra.mxu0 0.0
        %1717 = vmatprep.subr.mxu0 0.0
        %1718 = vmatpush1.msra.mxu0 0.0
        %1719 = vmatprep.subr.mxu0 0.0
        %1720 = vmatpush1.msra.mxu0 0.0
        %1721 = vmatprep.subr.mxu0 0.0
        %1722 = vmatpush1.msra.mxu0 0.0
        %1723 = vmatprep.subr.mxu0 0.0
        %1724 = vmatpush1.msra.mxu0 0.0
        %1725 = vmatprep.subr.mxu0 0.0
        %1726 = vmatpush1.msra.mxu0 0.0
        %1727 = vmatprep.subr.mxu0 0.0
        %1728 = vmatpush1.msra.mxu0 0.0
        %1729 = vmatprep.subr.mxu0 0.0
        %1730 = vmatpush1.msra.mxu0 0.0
        %1731 = vmatprep.subr.mxu0 0.0
        %1732 = vmatpush1.msra.mxu0 0.0
        %1733 = vmatprep.subr.mxu0 0.0
        %1734 = vmatpush1.msra.mxu0 0.0
        %1735 = vmatprep.subr.mxu0 0.0
        %1736 = vmatpush1.msra.mxu0 0.0
        %1737 = vmatprep.subr.mxu0 0.0
        %1738 = vmatpush1.msra.mxu0 0.0
        %1739 = vmatprep.subr.mxu0 0.0
        %1740 = vmatpush1.msra.mxu0 0.0
        %1741 = vmatprep.subr.mxu0 0.0
        %1742 = vmatpush1.msra.mxu0 0.0
        %1743 = vmatprep.subr.mxu0 0.0
        %1744 = vmatpush1.msra.mxu0 0.0
        %1745 = vmatprep.subr.mxu0 0.0
        %1746 = vmatpush1.msra.mxu0 0.0
        %1747 = vmatprep.subr.mxu0 0.0
        %1748 = vmatpush1.msra.mxu0 0.0
        %1749 = vmatprep.subr.mxu0 0.0
        %1750 = vmatpush1.msra.mxu0 0.0
        %1751 = vmatprep.subr.mxu0 0.0
        %1752 = vmatpush1.msra.mxu0 0.0
        %1753 = vmatprep.subr.mxu0 0.0
        %1754 = vmatpush1.msra.mxu0 0.0
        %1755 = vmatprep.mubr.f32.mxu0 0.0
        %1756 = vmatmul.mubr.f32.gmra.mrb[0].mxu0 %v1689
        %v1757 = vpop.f32.mrb[0].mxu0
        %v1758 = vadd.f32 %v888, %v1757
        %v1759 = vpop.f32.mrb[0].mxu0
        %1760 = vdwg.mxu0
        %1761 = vrot.lane.b32.xlu0 %v1466, 96
        %v1762 = vpop.permute.xlu0 %1761
        %v1764 = vadd.f32 %v1758, %v1762
        %v1765 = vxor.u32 %v1764, 2147483648
        %v1766 = vmul.f32 %v1765, 1.442695
        %v1767 = vpow.pop %v1766
        %v1768 = vadd.f32 %v1767, 1.0
        %v1769 = vrcp.pop %v1768
        %v1770 = vmul.f32 1.0, %v1769
        %1771 = vrot.lane.b32.xlu0 %v1466, 32
        %v1772 = vpop.permute.xlu0 %1771
        %v1774 = vmul.f32 %v1770, %v1772
        %1776 = vrot.lane.b32.xlu0 %v1774, 64
        %v1777 = vpop.permute.xlu0 %1776
        %v1779 = vadd.f32 %v1758, %v1777
        %v1780 = vtanh.pop %v1779
        %v1781 = vsub.f32 1.0, %v1770
        %1783 = vrot.lane.b32.xlu0 %v1780, 96
        %v1784 = vpop.permute.xlu0 %1783
        %v1786 = vmul.f32 %v1781, %v1784
        %v1787 = vmul.f32 %v1770, %v1391
        %v1788 = vadd.f32 %v1786, %v1787
        %s1789 = scalar_lea.vmem %s463, 6 [#allocation3]
        %v1790 = vld [vmem:[%s1789] sm:$0x3]
        %1792 = vrot.lane.b32.xlu0 %v1788, 96
        %v1793 = vpop.permute.xlu0 %1792
        %v1794 = vsel %vm576, %v1793, 0
        %1796 = vmatprep.subr.mxu0 0.0
        %1797 = vmatpush1.msra.mxu0 %v552
        %1798 = vmatprep.subr.mxu0 0.0
        %1799 = vmatpush1.msra.mxu0 %v553
        %1800 = vmatprep.subr.mxu0 0.0
        %1801 = vmatpush1.msra.mxu0 %v554
        %1802 = vmatprep.subr.mxu0 0.0
        %1803 = vmatpush1.msra.mxu0 %v555
        %1804 = vmatprep.subr.mxu0 0.0
        %1805 = vmatpush1.msra.mxu0 0.0
        %1806 = vmatprep.subr.mxu0 0.0
        %1807 = vmatpush1.msra.mxu0 0.0
        %1808 = vmatprep.subr.mxu0 0.0
        %1809 = vmatpush1.msra.mxu0 0.0
        %1810 = vmatprep.subr.mxu0 0.0
        %1811 = vmatpush1.msra.mxu0 0.0
        %1812 = vmatprep.subr.mxu0 0.0
        %1813 = vmatpush1.msra.mxu0 0.0
        %1814 = vmatprep.subr.mxu0 0.0
        %1815 = vmatpush1.msra.mxu0 0.0
        %1816 = vmatprep.subr.mxu0 0.0
        %1817 = vmatpush1.msra.mxu0 0.0
        %1818 = vmatprep.subr.mxu0 0.0
        %1819 = vmatpush1.msra.mxu0 0.0
        %1820 = vmatprep.subr.mxu0 0.0
        %1821 = vmatpush1.msra.mxu0 0.0
        %1822 = vmatprep.subr.mxu0 0.0
        %1823 = vmatpush1.msra.mxu0 0.0
        %1824 = vmatprep.subr.mxu0 0.0
        %1825 = vmatpush1.msra.mxu0 0.0
        %1826 = vmatprep.subr.mxu0 0.0
        %1827 = vmatpush1.msra.mxu0 0.0
        %1828 = vmatprep.subr.mxu0 0.0
        %1829 = vmatpush1.msra.mxu0 0.0
        %1830 = vmatprep.subr.mxu0 0.0
        %1831 = vmatpush1.msra.mxu0 0.0
        %1832 = vmatprep.subr.mxu0 0.0
        %1833 = vmatpush1.msra.mxu0 0.0
        %1834 = vmatprep.subr.mxu0 0.0
        %1835 = vmatpush1.msra.mxu0 0.0
        %1836 = vmatprep.subr.mxu0 0.0
        %1837 = vmatpush1.msra.mxu0 0.0
        %1838 = vmatprep.subr.mxu0 0.0
        %1839 = vmatpush1.msra.mxu0 0.0
        %1840 = vmatprep.subr.mxu0 0.0
        %1841 = vmatpush1.msra.mxu0 0.0
        %1842 = vmatprep.subr.mxu0 0.0
        %1843 = vmatpush1.msra.mxu0 0.0
        %1844 = vmatprep.subr.mxu0 0.0
        %1845 = vmatpush1.msra.mxu0 0.0
        %1846 = vmatprep.subr.mxu0 0.0
        %1847 = vmatpush1.msra.mxu0 0.0
        %1848 = vmatprep.subr.mxu0 0.0
        %1849 = vmatpush1.msra.mxu0 0.0
        %1850 = vmatprep.subr.mxu0 0.0
        %1851 = vmatpush1.msra.mxu0 0.0
        %1852 = vmatprep.subr.mxu0 0.0
        %1853 = vmatpush1.msra.mxu0 0.0
        %1854 = vmatprep.subr.mxu0 0.0
        %1855 = vmatpush1.msra.mxu0 0.0
        %1856 = vmatprep.subr.mxu0 0.0
        %1857 = vmatpush1.msra.mxu0 0.0
        %1858 = vmatprep.subr.mxu0 0.0
        %1859 = vmatpush1.msra.mxu0 0.0
        %1860 = vmatprep.mubr.f32.mxu0 0.0
        %1861 = vmatmul.mubr.f32.gmra.mrb[0].mxu0 %v1794
        %v1862 = vpop.f32.mrb[0].mxu0
        %v1863 = vadd.f32 %v574, %v1862
        %v1864 = vpop.f32.mrb[0].mxu0
        %1865 = vdwg.mxu0
        %v1868 = vunpack.c.l.s4 1966171168
        %v1869 = vunpack.c.0.s8 %v1868
        %v1870 = vlaneseq
        %v1871 = vshrl.u32 %v1870, 7
        %v1872 = vsub.s32 %v1869, %v1871
        %v1873 = vrot.slane %v1863, %v1872
        %v1874 = vcombine.high %v1873, %v1873
        %v1876 = vunpack.c.l.s4 1966171168
        %v1877 = vunpack.c.0.s8 %v1876
        %v1878 = vlaneseq
        %v1879 = vshrl.u32 %v1878, 7
        %v1880 = vsub.s32 %v1877, %v1879
        %v1881 = vrot.slane %v1873, %v1880
        %v1883 = vunpack.c.l.s4 1966171168
        %v1884 = vunpack.c.0.s8 %v1883
        %v1885 = vlaneseq
        %v1886 = vshrl.u32 %v1885, 7
        %v1887 = vsub.s32 %v1884, %v1886
        %v1888 = vrot.slane %v1874, %v1887
        %v1889 = vlaneseq
        %v1890 = vshrl.u32 %v1889, 7
        %v1891 = vsub.s32 0, %v1890
        %v1892 = vrot.slane %v1881, %v1891
        %v1893 = vlaneseq
        %v1894 = vshrl.u32 %v1893, 7
        %v1895 = vsub.s32 0, %v1894
        %v1896 = vrot.slane %v1888, %v1895
        %v1899 = vadd.f32 %v1892, %v543
        %v1900 = vadd.f32 %v1892, %v544
        %v1901 = vadd.f32 %v1896, %v545
        %v1902 = vadd.f32 %v1896, %v546
        %v1903 = vtanh.pop %v1899
        %v1904 = vtanh.pop %v1900
        %v1905 = vtanh.pop %v1901
        %v1906 = vtanh.pop %v1902
        %v1907 = vmul.f32 %v1903, %v695
        %v1908 = vmul.f32 %v1904, %v695
        %v1909 = vmul.f32 %v1905, %v695
        %v1910 = vmul.f32 %v1906, %v695
        %v1911 = vsel %vm576, %v1907, 0.0
        %1912 = vadd.xlane.f32.xlu0 %v1911
        %v1913 = vpop.xlane.xlu0 %1912
        %v1914 = vsel %vm704, %v1908, 0.0
        %1915 = vadd.xlane.f32.xlu0 %v1914
        %v1916 = vpop.xlane.xlu0 %1915
        %v1917 = vsel %vm576, %v1909, 0.0
        %1918 = vadd.xlane.f32.xlu0 %v1917
        %v1919 = vpop.xlane.xlu0 %1918
        %v1920 = vsel %vm704, %v1910, 0.0
        %1921 = vadd.xlane.f32.xlu0 %v1920
        %v1922 = vpop.xlane.xlu0 %1921
        %v1927 = vlaneseq
        %v1928 = vshrl.u32 %v1927, 7
        %v1929 = vsub.s32 %v719, %v1928
        %v1930 = vrot.slane %v1913, %v1929
        %v1931 = vlaneseq
        %v1932 = vshrl.u32 %v1931, 7
        %v1933 = vsub.s32 %v724, %v1932
        %v1934 = vrot.slane %v1916, %v1933
        %v1935 = vsel %vm729, %v1934, %v1930
        %v1936 = vlaneseq
        %v1937 = vshrl.u32 %v1936, 7
        %v1938 = vsub.s32 %v719, %v1937
        %v1939 = vrot.slane %v1919, %v1938
        %v1940 = vlaneseq
        %v1941 = vshrl.u32 %v1940, 7
        %v1942 = vsub.s32 %v724, %v1941
        %v1943 = vrot.slane %v1922, %v1942
        %v1944 = vsel %vm729, %v1943, %v1939
        %v1945 = vsel %vm740, %v1944, %v1935
        %v1947 = vsel %vm743, %v1945, -inf
        %1948 = vmax.xlane.f32.xlu0 %v1947
        %v1949 = vpop.xlane.xlu0 %1948
        %v1951 = vlaneseq
        %v1952 = vshrl.u32 %v1951, 7
        %v1953 = vsub.s32 0, %v1952
        %v1954 = vrot.slane %v1949, %v1953
        %v1955 = vlaneseq
        %v1956 = vshrl.u32 %v1955, 7
        %v1957 = vsub.s32 1, %v1956
        %v1958 = vrot.slane %v1949, %v1957
        %v1961 = vsub.f32 %v1913, %v1954
        %v1962 = vsub.f32 %v1916, %v1954
        %v1963 = vsub.f32 %v1919, %v1958
        %v1964 = vsub.f32 %v1922, %v1958
        %v1965 = vmul.f32 %v1961, 1.442695
        %v1966 = vpow.pop %v1965
        %v1967 = vmul.f32 %v1962, 1.442695
        %v1968 = vpow.pop %v1967
        %v1969 = vmul.f32 %v1963, 1.442695
        %v1970 = vpow.pop %v1969
        %v1971 = vmul.f32 %v1964, 1.442695
        %v1972 = vpow.pop %v1971
        %1977 = vset.pattern.permute.xlu0 0
        %1978 = vperm.xlu0 %1977, %v1966
        %v1979 = vpop.permute.xlu0 %1978
        %1980 = vset.pattern.permute.xlu0 0
        %1981 = vperm.xlu0 %1980, %v1968
        %v1982 = vpop.permute.xlu0 %1981
        %1983 = vset.pattern.permute.xlu0 0
        %1984 = vperm.xlu0 %1983, %v1970
        %v1985 = vpop.permute.xlu0 %1984
        %1986 = vset.pattern.permute.xlu0 0
        %1987 = vperm.xlu0 %1986, %v1972
        %v1988 = vpop.permute.xlu0 %1987
        %v1989 = vlaneseq
        %v1990 = vshrl.u32 %v1989, 7
        %v1991 = vsub.s32 %v719, %v1990
        %v1992 = vrot.slane %v1979, %v1991
        %v1993 = vlaneseq
        %v1994 = vshrl.u32 %v1993, 7
        %v1995 = vsub.s32 %v724, %v1994
        %v1996 = vrot.slane %v1982, %v1995
        %v1997 = vsel %vm729, %v1996, %v1992
        %v1998 = vlaneseq
        %v1999 = vshrl.u32 %v1998, 7
        %v2000 = vsub.s32 %v719, %v1999
        %v2001 = vrot.slane %v1985, %v2000
        %v2002 = vlaneseq
        %v2003 = vshrl.u32 %v2002, 7
        %v2004 = vsub.s32 %v724, %v2003
        %v2005 = vrot.slane %v1988, %v2004
        %v2006 = vsel %vm729, %v2005, %v2001
        %v2007 = vsel %vm740, %v2006, %v1997
        %v2009 = vsel %vm743, %v2007, 0.0
        %2010 = vadd.xlane.f32.xlu0 %v2009
        %v2011 = vpop.xlane.xlu0 %2010
        %v2012 = vrcp.pop %v2011
        %v2014 = vlaneseq
        %v2015 = vshrl.u32 %v2014, 7
        %v2016 = vsub.s32 0, %v2015
        %v2017 = vrot.slane %v2012, %v2016
        %v2018 = vlaneseq
        %v2019 = vshrl.u32 %v2018, 7
        %v2020 = vsub.s32 1, %v2019
        %v2021 = vrot.slane %v2012, %v2020
        %v2024 = vmul.f32 %v1966, %v2017
        %v2025 = vmul.f32 %v1968, %v2017
        %v2026 = vmul.f32 %v1970, %v2021
        %v2027 = vmul.f32 %v1972, %v2021
        %2029 = vset.pattern.permute.xlu0 0
        %2030 = vperm.xlu0 %2029, %v2024
        %v2031 = vpop.permute.xlu0 %2030
        %2034 = vset.pattern.permute.xlu0 0
        %2035 = vperm.xlu0 %2034, %v2025
        %v2036 = vpop.permute.xlu0 %2035
        %2039 = vset.pattern.permute.xlu0 0
        %2040 = vperm.xlu0 %2039, %v2026
        %v2041 = vpop.permute.xlu0 %2040
        %2044 = vset.pattern.permute.xlu0 0
        %2045 = vperm.xlu0 %2044, %v2027
        %v2046 = vpop.permute.xlu0 %2045
        %v2048 = vmul.f32 %v2031, %v547
        %v2049 = vmul.f32 %v2036, %v548
        %v2050 = vmul.f32 %v2041, %v549
        %v2051 = vmul.f32 %v2046, %v550
        %v2052 = vsel %vm849, %v2048, 0.0
        %v2053 = vsel %vm851, %v2049, 0.0
        %v2054 = vadd.f32 %v2052, %v2053
        %v2055 = vrot.slane %v2054, 4
        %v2056 = vadd.f32 %v2054, %v2055
        %v2057 = vrot.slane %v2056, 2
        %v2058 = vadd.f32 %v2056, %v2057
        %v2059 = vrot.slane %v2058, 1
        %v2060 = vadd.f32 %v2058, %v2059
        %v2061 = vsel %vm849, %v2050, 0.0
        %v2062 = vsel %vm851, %v2051, 0.0
        %v2063 = vadd.f32 %v2061, %v2062
        %v2064 = vrot.slane %v2063, 4
        %v2065 = vadd.f32 %v2063, %v2064
        %v2066 = vrot.slane %v2065, 2
        %v2067 = vadd.f32 %v2065, %v2066
        %v2068 = vrot.slane %v2067, 1
        %v2069 = vadd.f32 %v2067, %v2068
        %v2073 = vsel %vm740, %v2069, %v2060
        %2074 = vrot.lane.b32.xlu0 %v2073, 32
        %v2075 = vpop.permute.xlu0 %2074
        %v2077 = vsel %vm576, %v1793, %v2075
        %v2078 = vsel %vm876, %v2077, 0.0
        %s2079 = scalar_lea.vmem %s529, 6 [#allocation18]
        %2080 = vst [vmem:[%s2079] sm:$0x3] %v2078
        %2081 = vrot.lane.b32.xlu0 %v2073, 16
        %v2082 = vpop.permute.xlu0 %2081
        %v2084 = vsel %vm882, %v1790, %v2082
        %v2086 = vsel %vm890, %v2084, 0
        %2088 = vmatprep.subr.mxu0 0.0
        %2089 = vmatpush1.msra.mxu0 %v557
        %2090 = vmatprep.subr.mxu0 0.0
        %2091 = vmatpush1.msra.mxu0 %v558
        %2092 = vmatprep.subr.mxu0 0.0
        %2093 = vmatpush1.msra.mxu0 %v559
        %2094 = vmatprep.subr.mxu0 0.0
        %2095 = vmatpush1.msra.mxu0 %v560
        %2096 = vmatprep.subr.mxu0 0.0
        %2097 = vmatpush1.msra.mxu0 %v561
        %2098 = vmatprep.subr.mxu0 0.0
        %2099 = vmatpush1.msra.mxu0 %v562
        %2100 = vmatprep.subr.mxu0 0.0
        %2101 = vmatpush1.msra.mxu0 %v563
        %2102 = vmatprep.subr.mxu0 0.0
        %2103 = vmatpush1.msra.mxu0 %v564
        %2104 = vmatprep.subr.mxu0 0.0
        %2105 = vmatpush1.msra.mxu0 %v565
        %2106 = vmatprep.subr.mxu0 0.0
        %2107 = vmatpush1.msra.mxu0 %v566
        %2108 = vmatprep.subr.mxu0 0.0
        %2109 = vmatpush1.msra.mxu0 0.0
        %2110 = vmatprep.subr.mxu0 0.0
        %2111 = vmatpush1.msra.mxu0 0.0
        %2112 = vmatprep.subr.mxu0 0.0
        %2113 = vmatpush1.msra.mxu0 0.0
        %2114 = vmatprep.subr.mxu0 0.0
        %2115 = vmatpush1.msra.mxu0 0.0
        %2116 = vmatprep.subr.mxu0 0.0
        %2117 = vmatpush1.msra.mxu0 0.0
        %2118 = vmatprep.subr.mxu0 0.0
        %2119 = vmatpush1.msra.mxu0 0.0
        %2120 = vmatprep.subr.mxu0 0.0
        %2121 = vmatpush1.msra.mxu0 0.0
        %2122 = vmatprep.subr.mxu0 0.0
        %2123 = vmatpush1.msra.mxu0 0.0
        %2124 = vmatprep.subr.mxu0 0.0
        %2125 = vmatpush1.msra.mxu0 0.0
        %2126 = vmatprep.subr.mxu0 0.0
        %2127 = vmatpush1.msra.mxu0 0.0
        %2128 = vmatprep.subr.mxu0 0.0
        %2129 = vmatpush1.msra.mxu0 0.0
        %2130 = vmatprep.subr.mxu0 0.0
        %2131 = vmatpush1.msra.mxu0 0.0
        %2132 = vmatprep.subr.mxu0 0.0
        %2133 = vmatpush1.msra.mxu0 0.0
        %2134 = vmatprep.subr.mxu0 0.0
        %2135 = vmatpush1.msra.mxu0 0.0
        %2136 = vmatprep.subr.mxu0 0.0
        %2137 = vmatpush1.msra.mxu0 0.0
        %2138 = vmatprep.subr.mxu0 0.0
        %2139 = vmatpush1.msra.mxu0 0.0
        %2140 = vmatprep.subr.mxu0 0.0
        %2141 = vmatpush1.msra.mxu0 0.0
        %2142 = vmatprep.subr.mxu0 0.0
        %2143 = vmatpush1.msra.mxu0 0.0
        %2144 = vmatprep.subr.mxu0 0.0
        %2145 = vmatpush1.msra.mxu0 0.0
        %2146 = vmatprep.subr.mxu0 0.0
        %2147 = vmatpush1.msra.mxu0 0.0
        %2148 = vmatprep.subr.mxu0 0.0
        %2149 = vmatpush1.msra.mxu0 0.0
        %2150 = vmatprep.subr.mxu0 0.0
        %2151 = vmatpush1.msra.mxu0 0.0
        %2152 = vmatprep.mubr.f32.mxu0 0.0
        %2153 = vmatmul.mubr.f32.gmra.mrb[0].mxu0 %v2086
        %v2154 = vpop.f32.mrb[0].mxu0
        %v2155 = vadd.f32 %v888, %v2154
        %v2156 = vpop.f32.mrb[0].mxu0
        %2157 = vdwg.mxu0
        %2158 = vrot.lane.b32.xlu0 %v1863, 96
        %v2159 = vpop.permute.xlu0 %2158
        %v2161 = vadd.f32 %v2155, %v2159
        %v2162 = vxor.u32 %v2161, 2147483648
        %v2163 = vmul.f32 %v2162, 1.442695
        %v2164 = vpow.pop %v2163
        %v2165 = vadd.f32 %v2164, 1.0
        %v2166 = vrcp.pop %v2165
        %v2167 = vmul.f32 1.0, %v2166
        %2168 = vrot.lane.b32.xlu0 %v1863, 32
        %v2169 = vpop.permute.xlu0 %2168
        %v2171 = vmul.f32 %v2167, %v2169
        %2173 = vrot.lane.b32.xlu0 %v2171, 64
        %v2174 = vpop.permute.xlu0 %2173
        %v2176 = vadd.f32 %v2155, %v2174
        %v2177 = vtanh.pop %v2176
        %v2178 = vsub.f32 1.0, %v2167
        %2180 = vrot.lane.b32.xlu0 %v2177, 96
        %v2181 = vpop.permute.xlu0 %2180
        %v2183 = vmul.f32 %v2178, %v2181
        %v2184 = vmul.f32 %v2167, %v1788
        %v2185 = vadd.f32 %v2183, %v2184
        %2187 = vrot.lane.b32.xlu0 %v2185, 96
        %v2188 = vpop.permute.xlu0 %2187
        %2190 = vst.msk [vmem:[#allocation2] sm:$0x3] %vm704, %v2188
        %2191 = vst.msk [vmem:[#allocation19] sm:$0x3] %vm704, %v2188
        %s2192 = sand.u32 %s266, 1
        %s2193 = scalar_lea.sflag [#allocation5], %s2192
        %s2194 = sand.u32 %s266, 1
        %s2195 = smul.addr %s2194, 8
        %s2196 = scalar_lea.vmem [#allocation18], %s2195
        // Predicated region
        $region97: #{decoder_rnnsearch_forward.1} parent=55 // pred_check
          %p2197 = pneg %p276
        $region98: #{decoder_rnnsearch_forward.1} parent=55 // pred_check_branch
          %2199 = sbr.rel (%p2197) target = $region100
        $region99: #{decoder_rnnsearch_forward.1} parent=55 // pred_region
          %s2200 = smul.u32 4, %s38
          %s2202 = ssub.s32 128, 128
          %2203 = vsyncadd %s2193, %s2202
          %s2204 = sadd.s32 %s37, %s2200
          %s2205 = smul.addr %s2204, 32
          %s2206 = scalar_lea.hbm %s9, %s2205
          %s2207 = sshll.u32 %s2196, 4
          %s2208 = int_to_ptr.vmem [resolvable:$true] %s2207
          %2213 = dma.vmem_to_hbm [thread:$0]  %s2208, 128, %s2206, %s2193, 32, 32, 2
        $region100: #{decoder_rnnsearch_forward.1} parent=55 // pred_fallthru
          _
        // Predicated region
        $region101: #{decoder_rnnsearch_forward.1} parent=55 // pred_check
          %p2214 = pneg %p302
        $region102: #{decoder_rnnsearch_forward.1} parent=55 // pred_check_branch
          %2216 = sbr.rel (%p2214) target = $region104
        $region103: #{decoder_rnnsearch_forward.1} parent=55 // pred_region
          %s2218 = ssub.s32 32, 32
          %2219 = vsyncadd [#allocation20], %s2218
          %s2220 = smul.addr %s37, 32
          %s2221 = scalar_lea.hbm %s10, %s2220
          %s2223 = sshll.u32 [#allocation19], 4
          %s2224 = int_to_ptr.vmem [resolvable:$true] %s2223
          %2226 = dma.vmem_to_hbm [thread:$0]  %s2224, 32, %s2221, [#allocation20]
        $region104: #{decoder_rnnsearch_forward.1} parent=55 // pred_fallthru
          _
        // Predicated region
        $region105: #{decoder_rnnsearch_forward.1} parent=55 // pred_check
          %p2227 = pneg %p302
        $region106: #{decoder_rnnsearch_forward.1} parent=55 // pred_check_branch
          %2229 = sbr.rel (%p2227) target = $region108
        $region107: #{decoder_rnnsearch_forward.1} parent=55 // pred_region
          %2230 = dma.done [#allocation20], 32
        $region108: #{decoder_rnnsearch_forward.1} parent=55 // pred_fallthru
          _
      $region56: #{decoder_rnnsearch_forward.1} parent=5 // pred_fallthru
        _
      %p2231 = scmp.le.s32.totalorder 2, %s28
      // Predicated region
      $region109: #{decoder_rnnsearch_forward.1} parent=5 // pred_check
        %p2232 = pneg %p2231
      $region110: #{decoder_rnnsearch_forward.1} parent=5 // pred_check_branch
        %2234 = sbr.rel (%p2232) target = $region112
      $region111: #{decoder_rnnsearch_forward.1} parent=5 // pred_region
        %s2235 = ssub.s32 %s28, 2
        // Predicated region
        $region113: #{decoder_rnnsearch_forward.1} parent=111 // pred_check
          %p2236 = pneg %p282
        $region114: #{decoder_rnnsearch_forward.1} parent=111 // pred_check_branch
          %2238 = sbr.rel (%p2236) target = $region116
        $region115: #{decoder_rnnsearch_forward.1} parent=111 // pred_region
          %s2239 = sand.u32 %s267, 1
          %s2240 = scalar_lea.sflag [#allocation5], %s2239
          %s2241 = sand.u32 %s267, 1
          %s2242 = smul.addr %s2241, 8
          %s2243 = scalar_lea.vmem [#allocation18], %s2242
          %2244 = dma.done %s2240, 128
        $region116: #{decoder_rnnsearch_forward.1} parent=111 // pred_fallthru
          _
      $region112: #{decoder_rnnsearch_forward.1} parent=5 // pred_fallthru
        _
    $region6: #{decoder_rnnsearch_forward.1} parent=1 // loop_footer
      %s32 = sadd.s32 1, %s28
    $region7: #{decoder_rnnsearch_forward.1} parent=1 // loop_footer_branch
      %27 = sbr.rel target = $region3
    $region8: #{decoder_rnnsearch_forward.1} parent=1 // loop_exit
      _
    %2245 = vsyncpa [#allocation4], 1
    %s2246 = scalar_lea.sflag [#allocation4], 1
    %2247 = vsyncpa %s2246, 1
    %2248 = vsyncpa [#allocation7], 1
    %2249 = vsyncpa [#allocation10], 1
    %2250 = vsyncpa [#allocation13], 1
    %2251 = vsyncpa [#allocation16], 1
    %2252 = vsyncpa [#allocation5], 1
    %s2253 = scalar_lea.sflag [#allocation5], 1
    %2254 = vsyncpa %s2253, 1
    %2255 = vsyncpa [#allocation20], 1

</llo_original>
